<compile_context>
chip_gen: v5e
topology: v5e:2x2
jax: 0.10.0
libtpu: 0.0.40
codegen_flags: <defaults>
</compile_context>

<pallas_src>
import functools
from typing import NamedTuple

import jax
import jax.numpy as jnp
from jax.experimental import pallas as pl
from jax.experimental.pallas import tpu as pltpu


class DecoderConfig(NamedTuple):
    b_pad: int
    tile_v: int
    n_v_tiles: int
    v_pad: int
    vocab: int
    vmem_limit: int


def _round_up(x: int, m: int) -> int:
    return ((x + m - 1) // m) * m


def _vmem_capacity_bytes() -> int:
    """Physical per-core VMEM; falls back to the smallest generation (v7x, 64 MiB)."""
    try:
        cap = getattr(pltpu.get_tpu_info(), "vmem_capacity_bytes", None)
        if cap:
            return int(cap)
    except Exception:
        pass
    return 64 * 1024 * 1024


def _select_fc_tiling(*, H, D, E, A, S, V, b_pad):
    """Pick (tile_v, n_tiles, v_pad, vmem_limit) for the fc_out vocab stream."""
    vmem_cap = _vmem_capacity_bytes()
    if vmem_cap <= 64 * 1024 * 1024:
        vmem_limit = 44 * 1024 * 1024     # v7x: 64 MiB physical, leave compiler headroom
    else:
        vmem_limit = 96 * 1024 * 1024     # v5e / v6e: 128 MiB physical

    # Constant-index_map inputs + the hout output block are double-buffered.
    resident = 2 * (
        b_pad * E * 2 + b_pad * H * 4 + b_pad * S * D * 2 + b_pad * S * 4
        + (H + D) * A * 2 + 2 * A * 4
        + 3 * (E + D + H) * H * 2 + 6 * H * 4
        + b_pad * H * 4
    )
    resident += b_pad * H * 4 + b_pad * 8 * D * 4          # scratch (single-buffered)
    # Per vocab column (double-buffered): bf16 fc_w slabs + f32 bias + f32 pred tile.
    per_col = 2 * ((H + D + E) * 2 + 4 + b_pad * 4)
    budget = vmem_limit - resident - 8 * 1024 * 1024        # extra compiler headroom
    tile_v = max(256, min(2048, (max(budget, 0) // per_col) // 256 * 256))
    tile_v = min(tile_v, max(256, _round_up(V, 256)))        # don't over-pad tiny vocabs
    n_tiles = -(-V // tile_v)
    return int(tile_v), int(n_tiles), int(n_tiles * tile_v), int(vmem_limit)


def prepare_decoder_params(params, *, batch_size, src_len, tile_v=None):
    """One-time weight preprocessing (hoisted out of the per-step call):
    split / stack per gate / pad / cast all MXU operands to bf16."""
    bf16, f32 = jnp.bfloat16, jnp.float32
    E = params["embedding"].shape[1]
    H = params["w_hh"].shape[0]
    A = params["attn_w"].shape[1]
    V = params["fc_w"].shape[1]
    D = params["attn_w"].shape[0] - H       # 2 * enc_hid_dim

    b_pad = _round_up(max(batch_size, 1), 16)     # bf16 packs 16 rows per sublane group
    auto_tile, auto_n, auto_vpad, vmem_limit = _select_fc_tiling(
        H=H, D=D, E=E, A=A, S=src_len, V=V, b_pad=b_pad)
    if tile_v is None:
        tile_v, n_tiles, v_pad = auto_tile, auto_n, auto_vpad
    else:
        assert tile_v % 128 == 0
        n_tiles = -(-V // tile_v)
        v_pad = n_tiles * tile_v

    def split_gates(w):   # [in, 3H] -> [3, in, H]   (PyTorch gate order r, z, n)
        return jnp.stack([w[:, g * H:(g + 1) * H] for g in range(3)], axis=0)

    attn_w = params["attn_w"]
    w_ih = params["w_ih"]
    fc_w = params["fc_w"]
    pad_v = lambda x: jnp.pad(x, ((0, 0), (0, v_pad - V)))

    weights = {
        "embedding": params["embedding"].astype(bf16),
        # attention: rows [:H] act on hidden, rows [H:] on encoder outputs
        "attn_wh": attn_w[:H].astype(bf16),          # [H, A]
        "attn_we": attn_w[H:].astype(bf16),          # [D, A]
        "attn_b": params["attn_b"].astype(f32),      # [1, A]
        "v_w": params["v_w"].astype(f32),            # [1, A]
        # GRU: rows [:E] act on embedded, rows [E:] on context; per-gate stacks
        "w_ih_e": split_gates(w_ih[:E]).astype(bf16),        # [3, E, H]
        "w_ih_c": split_gates(w_ih[E:]).astype(bf16),        # [3, D, H]
        "w_hh": split_gates(params["w_hh"]).astype(bf16),    # [3, H, H]
        "b_ih": split_gates(params["b_ih"]).astype(f32),     # [3, 1, H]
        "b_hh": split_gates(params["b_hh"]).astype(f32),     # [3, 1, H]
        # fc_out split by input chunk, padded along the vocab axis
        "fc_wh": pad_v(fc_w[:H]).astype(bf16),               # [H, V_pad]
        "fc_wc": pad_v(fc_w[H:H + D]).astype(bf16),          # [D, V_pad]
        "fc_we": pad_v(fc_w[H + D:]).astype(bf16),           # [E, V_pad]
        "fc_b": pad_v(params["fc_b"]).astype(f32),           # [1, V_pad]
    }
    cfg = DecoderConfig(b_pad=int(b_pad), tile_v=int(tile_v), n_v_tiles=int(n_tiles),
                        v_pad=int(v_pad), vocab=int(V), vmem_limit=int(vmem_limit))
    return weights, cfg


def decoder_kernel(
    # activations
    emb_ref,        # [B, E]     bf16
    hidden_ref,     # [B, H]     f32
    enc_ref,        # [B, S, D]  bf16   (D = 2*enc_hid)
    mask_ref,       # [B, S]     f32
    # attention weights
    attn_wh_ref,    # [H, A]     bf16
    attn_we_ref,    # [D, A]     bf16
    attn_b_ref,     # [1, A]     f32
    v_w_ref,        # [1, A]     f32
    # GRU weights (stacked per gate: r, z, n)
    w_ih_e_ref,     # [3, E, H]  bf16
    w_ih_c_ref,     # [3, D, H]  bf16
    w_hh_ref,       # [3, H, H]  bf16
    b_ih_ref,       # [3, 1, H]  f32
    b_hh_ref,       # [3, 1, H]  f32
    # fc_out weights (streamed per vocab tile)
    fc_wh_ref,      # [H, T]     bf16
    fc_wc_ref,      # [D, T]     bf16
    fc_we_ref,      # [E, T]     bf16
    fc_b_ref,       # [1, T]     f32
    # outputs
    pred_ref,       # [B, T]     f32
    hout_ref,       # [B, H]     f32
    # scratch (persists across the vocab grid)
    h_sc,           # [B, H]     f32
    ctx_sc,         # [B, 1, D]  f32
):
    f32 = jnp.float32
    bf16 = jnp.bfloat16
    j = pl.program_id(0)

    @pl.when(j == 0)
    def _attention_and_gru():
        emb = emb_ref[...]                        # bf16
        hidden = hidden_ref[...]                  # f32
        enc = enc_ref[...]                        # bf16
        mask = mask_ref[...]
        B, S, D = enc.shape
        H = hidden.shape[1]
        hid_bf = hidden.astype(bf16)

        # Attention energies without materializing concat([hidden_rep, enc]):
        #   tanh([hid, enc] @ W + b) == tanh(hid @ W[:H] + enc @ W[H:] + b)
        hid_part = (
            jnp.dot(hid_bf, attn_wh_ref[...], preferred_element_type=f32)
            + attn_b_ref[...]
        )                                                               # [B, A]
        enc_part = jnp.dot(
            enc.reshape(B * S, D), attn_we_ref[...], preferred_element_type=f32,
        ).reshape(B, S, -1)                                             # [B, S, A]
        energy = jnp.tanh(enc_part + hid_part[:, None, :])              # [B, S, A] f32

        # score = energy . v  (A tiny here: lane reduce; XLU slot is free).
        # TODO(synk): for attn_dim >= 128, do this as a [B*S, A] @ [A, 1] MXU matvec.
        score = jnp.sum(energy * v_w_ref[...], axis=2)                  # [B, S]
        score = jnp.where(mask == 0, jnp.float32(-1e10), score)

        # softmax over src_len; denominator reciprocal on the EUP (approx, ~1e-3
        # rel error, well inside the bf16-operand tolerance of this kernel).
        score = score - jnp.max(score, axis=1, keepdims=True)
        p = jnp.exp(score)
        attn = p * pl.reciprocal(jnp.sum(p, axis=1, keepdims=True), approx=True)

        # context = bmm(attn[B,1,S], enc[B,S,D]) on the MXU (bf16, f32 accumulate);
        # squeeze the size-1 dim through the scratch ref-view (no vreg relayout).
        ctx3 = jnp.einsum("bqs,bsd->bqd", attn[:, None, :].astype(bf16), enc,
                          preferred_element_type=f32)                   # [B, 1, D]
        ctx_sc[...] = ctx3
        context = ctx_sc[:, 0, :]                                       # [B, D] f32
        ctx_bf = context.astype(bf16)

        # GRU single step, per-gate weights (PyTorch order r, z, n); gate math f32.
        def gx(g):
            return (jnp.dot(emb, w_ih_e_ref[g], preferred_element_type=f32)
                    + jnp.dot(ctx_bf, w_ih_c_ref[g], preferred_element_type=f32)
                    + b_ih_ref[g])

        def gh(g):
            return jnp.dot(hid_bf, w_hh_ref[g], preferred_element_type=f32) + b_hh_ref[g]

        r = jax.nn.sigmoid(gx(0) + gh(0))
        z = jax.nn.sigmoid(gx(1) + gh(1))
        n = jnp.tanh(gx(2) + r * gh(2))
        h_new = (1.0 - z) * n + z * hidden                               # [B, H] f32

        h_sc[...] = h_new
        hout_ref[...] = h_new

    # fc_out vocab tile (every grid step): pred = [h, ctx, emb] @ fc_w + b,
    # computed as three bf16 matmuls summed in f32 (no concat).
    h_bf = h_sc[...].astype(bf16)
    c_bf = ctx_sc[:, 0, :].astype(bf16)
    pred_ref[...] = (
        jnp.dot(h_bf, fc_wh_ref[...], preferred_element_type=f32)
        + jnp.dot(c_bf, fc_wc_ref[...], preferred_element_type=f32)
        + jnp.dot(emb_ref[...], fc_we_ref[...], preferred_element_type=f32)
        + fc_b_ref[...]
    )


def _const_spec(shape):
    zeros = (0,) * len(shape)
    return pl.BlockSpec(shape, lambda j, _z=zeros: _z)


@functools.partial(jax.jit, static_argnames=("cfg",))
def decoder_forward(weights, cfg, input_tokens, hidden, encoder_outputs, mask):
    """Embedding gather in JAX glue; attention + GRU + fc_out in one Pallas kernel."""
    bf16, f32 = jnp.bfloat16, jnp.float32
    # TODO(synk): nn.Dropout is a no-op in eval mode; not applied here.
    emb = jnp.take(weights["embedding"], input_tokens, axis=0)          # [B, E] bf16

    B, S, D = encoder_outputs.shape
    H = hidden.shape[1]
    E = emb.shape[1]
    A = weights["attn_b"].shape[1]
    b_pad, tile_v = cfg.b_pad, cfg.tile_v

    def pad_b(x):
        return jnp.pad(x, ((0, b_pad - x.shape[0]),) + ((0, 0),) * (x.ndim - 1))

    emb_p = pad_b(emb)                              # bf16
    hidden_p = pad_b(hidden).astype(f32)
    enc_p = pad_b(encoder_outputs).astype(bf16)
    mask_p = pad_b(mask).astype(f32)

    # TODO(synk): pipeline_mode=pl.Buffered(1) on the constant-index inputs would
    # halve their resident footprint; left at the default for lowering portability.
    in_specs = [
        _const_spec((b_pad, E)),          # emb            (VMEM-resident)
        _const_spec((b_pad, H)),          # hidden
        _const_spec((b_pad, S, D)),       # encoder_outputs
        _const_spec((b_pad, S)),          # mask
        _const_spec((H, A)),              # attn_wh
        _const_spec((D, A)),              # attn_we
        _const_spec((1, A)),              # attn_b
        _const_spec((1, A)),              # v_w
        _const_spec((3, E, H)),           # w_ih_e (per-gate stack)
        _const_spec((3, D, H)),           # w_ih_c
        _const_spec((3, H, H)),           # w_hh
        _const_spec((3, 1, H)),           # b_ih
        _const_spec((3, 1, H)),           # b_hh
        # fc_out: streamed HBM->VMEM per vocab tile (double-buffered by the pipeline)
        pl.BlockSpec((H, tile_v), lambda j: (0, j)),
        pl.BlockSpec((D, tile_v), lambda j: (0, j)),
        pl.BlockSpec((E, tile_v), lambda j: (0, j)),
        pl.BlockSpec((1, tile_v), lambda j: (0, j)),
    ]
    out_specs = [
        pl.BlockSpec((b_pad, tile_v), lambda j: (0, j)),   # pred: lane-dense tiles
        pl.BlockSpec((b_pad, H), lambda j: (0, 0)),        # hout: resident, written at j==0
    ]

    grid_spec = pltpu.PrefetchScalarGridSpec(
        num_scalar_prefetch=0,
        grid=(cfg.n_v_tiles,),
        in_specs=in_specs,
        out_specs=out_specs,
        scratch_shapes=[
            pltpu.VMEM((b_pad, H), f32),      # h_new, reused by every fc tile
            pltpu.VMEM((b_pad, 1, D), f32),   # context, reused by every fc tile
        ],
    )

    cost = pl.CostEstimate(
        flops=int(2 * b_pad * (H + D + E) * cfg.v_pad
                  + 2 * b_pad * S * D * A + 2 * b_pad * H * A + 2 * b_pad * S * D
                  + 2 * b_pad * (E + D + H) * 3 * H),
        transcendentals=int(b_pad * S * (A + 1) + 3 * b_pad * H),
        bytes_accessed=int((H + D + E) * cfg.v_pad * 2 + cfg.v_pad * 4   # fc weights + bias
                           + b_pad * cfg.v_pad * 4                       # pred
                           + b_pad * S * (D * 2 + 4)                     # enc + mask
                           + b_pad * (E * 2 + 2 * H * 4)),
    )

    pred_p, hout_p = pl.pallas_call(
        decoder_kernel,
        grid_spec=grid_spec,
        out_shape=(
            jax.ShapeDtypeStruct((b_pad, cfg.v_pad), f32),
            jax.ShapeDtypeStruct((b_pad, H), f32),
        ),
        # The vocab axis must be "arbitrary": h/context live in VMEM scratch filled
        # at j == 0 and the hout output block is revisited across the grid.
        compiler_params=pltpu.CompilerParams(
            dimension_semantics=("arbitrary",),
            vmem_limit_bytes=cfg.vmem_limit,
        ),
        cost_estimate=cost,
        # hidden (input 1) and the new hidden (output 1) share an HBM buffer.
        input_output_aliases={1: 1},
    )(
        emb_p, hidden_p, enc_p, mask_p,
        weights["attn_wh"], weights["attn_we"], weights["attn_b"], weights["v_w"],
        weights["w_ih_e"], weights["w_ih_c"], weights["w_hh"],
        weights["b_ih"], weights["b_hh"],
        weights["fc_wh"], weights["fc_wc"], weights["fc_we"], weights["fc_b"],
    )

    return pred_p[:B, :cfg.vocab], hout_p[:B, :H]


def decoder_forward_ref(params, input_tokens, hidden, encoder_outputs, mask):
    """Pure-JAX f32 reference of the same math (for a sanity check)."""
    emb = jnp.take(params["embedding"], input_tokens, axis=0)
    B, S, D = encoder_outputs.shape
    H = hidden.shape[1]
    hid_rep = jnp.broadcast_to(hidden[:, None, :], (B, S, H))
    feat = jnp.concatenate([hid_rep, encoder_outputs], axis=2)
    energy = jnp.tanh(feat.reshape(B * S, -1) @ params["attn_w"] + params["attn_b"])
    score = jnp.sum(energy.reshape(B, S, -1) * params["v_w"], axis=2)
    score = jnp.where(mask == 0, -1e10, score)
    attn = jax.nn.softmax(score, axis=1)
    context = jnp.sum(attn[:, :, None] * encoder_outputs, axis=1)
    x = jnp.concatenate([emb, context], axis=1)
    gx = x @ params["w_ih"] + params["b_ih"]
    gh = hidden @ params["w_hh"] + params["b_hh"]
    r = jax.nn.sigmoid(gx[:, :H] + gh[:, :H])
    z = jax.nn.sigmoid(gx[:, H:2 * H] + gh[:, H:2 * H])
    n = jnp.tanh(gx[:, 2 * H:] + r * gh[:, 2 * H:])
    h_new = (1.0 - z) * n + z * hidden
    cat = jnp.concatenate([h_new, context, emb], axis=1)
    pred = cat @ params["fc_w"] + params["fc_b"]
    return pred, h_new


def init_params(key, output_dim, emb_dim, enc_hid_dim, dec_hid_dim, attn_dim):
    D = enc_hid_dim * 2
    keys = jax.random.split(key, 12)
    s = 0.1
    params = {
        "embedding": s * jax.random.normal(keys[0], (output_dim, emb_dim), jnp.float32),
        # Attention: Linear(dec_hid + D -> attn_dim), v: Linear(attn_dim -> 1, no bias)
        "attn_w": s * jax.random.normal(keys[1], (dec_hid_dim + D, attn_dim), jnp.float32),
        "attn_b": s * jax.random.normal(keys[2], (1, attn_dim), jnp.float32),
        "v_w":    s * jax.random.normal(keys[3], (1, attn_dim), jnp.float32),
        # GRU: input_size = emb_dim + D, hidden = dec_hid_dim, gates ordered r,z,n
        "w_ih": s * jax.random.normal(keys[4], (emb_dim + D, 3 * dec_hid_dim), jnp.float32),
        "b_ih": s * jax.random.normal(keys[5], (1, 3 * dec_hid_dim), jnp.float32),
        "w_hh": s * jax.random.normal(keys[6], (dec_hid_dim, 3 * dec_hid_dim), jnp.float32),
        "b_hh": s * jax.random.normal(keys[7], (1, 3 * dec_hid_dim), jnp.float32),
        # fc_out: Linear(dec_hid + D + emb -> output_dim)
        "fc_w": s * jax.random.normal(keys[8], (dec_hid_dim + D + emb_dim, output_dim), jnp.float32),
        "fc_b": s * jax.random.normal(keys[9], (1, output_dim), jnp.float32),
    }
    return params


if __name__ == "__main__":
    # Small shapes consistent with the module's forward.
    B = 2            # batch
    S = 8            # src_len
    OUTPUT_DIM = 32  # vocab size
    EMB = 16
    ENC_HID = 16     # encoder outputs have 2*ENC_HID = 32 features
    DEC_HID = 32
    ATTN = 32

    key = jax.random.PRNGKey(0)
    kp, k1, k2, k3 = jax.random.split(key, 4)

    params = init_params(kp, OUTPUT_DIM, EMB, ENC_HID, DEC_HID, ATTN)

    input_tokens = jax.random.randint(k1, (B,), 0, OUTPUT_DIM, dtype=jnp.int32)
    hidden = jax.random.normal(k2, (B, DEC_HID), jnp.float32)
    encoder_outputs = jax.random.normal(k3, (B, S, 2 * ENC_HID), jnp.float32)
    mask = jnp.ones((B, S), jnp.float32).at[1, S - 2:].set(0.0)  # mask some padding

    # One-time weight preprocessing (hoisted out of the per-step call).
    weights, cfg = prepare_decoder_params(params, batch_size=B, src_len=S)

    pred, h_new = decoder_forward(weights, cfg, input_tokens, hidden, encoder_outputs, mask)
    jax.block_until_ready((pred, h_new))

    pred_ref, h_ref = decoder_forward_ref(params, input_tokens, hidden, encoder_outputs, mask)
    assert pred.shape == (B, OUTPUT_DIM) and h_new.shape == (B, DEC_HID)
    # Tolerances account for bf16 MXU operands (the f32 reference uses f32 matmuls).
    assert jnp.allclose(pred, pred_ref, rtol=5e-2, atol=5e-2)
    assert jnp.allclose(h_new, h_ref, rtol=5e-2, atol=5e-2)

    print("KERNEL_OK")
</pallas_src>

<mosaic_0001>
module attributes {stable_mosaic.version = 11 : i64} {
  func.func @decoder_kernel(%arg0: i32, %arg1: memref<16x16xbf16, #tpu.memory_space<vmem>>, %arg2: memref<16x32xf32, #tpu.memory_space<vmem>>, %arg3: memref<16x8x32xbf16, #tpu.memory_space<vmem>>, %arg4: memref<16x8xf32, #tpu.memory_space<vmem>>, %arg5: memref<32x32xbf16, #tpu.memory_space<vmem>>, %arg6: memref<32x32xbf16, #tpu.memory_space<vmem>>, %arg7: memref<1x32xf32, #tpu.memory_space<vmem>>, %arg8: memref<1x32xf32, #tpu.memory_space<vmem>>, %arg9: memref<3x16x32xbf16, #tpu.memory_space<vmem>>, %arg10: memref<3x32x32xbf16, #tpu.memory_space<vmem>>, %arg11: memref<3x32x32xbf16, #tpu.memory_space<vmem>>, %arg12: memref<3x1x32xf32, #tpu.memory_space<vmem>>, %arg13: memref<3x1x32xf32, #tpu.memory_space<vmem>>, %arg14: memref<32x256xbf16, #tpu.memory_space<vmem>>, %arg15: memref<32x256xbf16, #tpu.memory_space<vmem>>, %arg16: memref<16x256xbf16, #tpu.memory_space<vmem>>, %arg17: memref<1x256xf32, #tpu.memory_space<vmem>>, %arg18: memref<16x256xf32, #tpu.memory_space<vmem>>, %arg19: memref<16x32xf32, #tpu.memory_space<vmem>>, %arg20: memref<16x32xf32, #tpu.memory_space<vmem>>, %arg21: memref<16x1x32xf32, #tpu.memory_space<vmem>>) attributes {dimension_semantics = [#tpu.dimension_semantics<arbitrary>], iteration_bounds = array<i64: 1>, scalar_prefetch = 0 : i64, scratch_operands = 2 : i64, tpu.core_type = #tpu.core_type<tc>, window_params = [{pipeline_mode = #tpu.pipeline_mode<synchronous>, transform_indices = @transform_0, window_bounds = array<i64: 16, 16>}, {pipeline_mode = #tpu.pipeline_mode<synchronous>, transform_indices = @transform_1, window_bounds = array<i64: 16, 32>}, {pipeline_mode = #tpu.pipeline_mode<synchronous>, transform_indices = @transform_2, window_bounds = array<i64: 16, 8, 32>}, {pipeline_mode = #tpu.pipeline_mode<synchronous>, transform_indices = @transform_3, window_bounds = array<i64: 16, 8>}, {pipeline_mode = #tpu.pipeline_mode<synchronous>, transform_indices = @transform_4, window_bounds = array<i64: 32, 32>}, {pipeline_mode = #tpu.pipeline_mode<synchronous>, transform_indices = @transform_5, window_bounds = array<i64: 32, 32>}, {pipeline_mode = #tpu.pipeline_mode<synchronous>, transform_indices = @transform_6, window_bounds = array<i64: 1, 32>}, {pipeline_mode = #tpu.pipeline_mode<synchronous>, transform_indices = @transform_7, window_bounds = array<i64: 1, 32>}, {pipeline_mode = #tpu.pipeline_mode<synchronous>, transform_indices = @transform_8, window_bounds = array<i64: 3, 16, 32>}, {pipeline_mode = #tpu.pipeline_mode<synchronous>, transform_indices = @transform_9, window_bounds = array<i64: 3, 32, 32>}, {pipeline_mode = #tpu.pipeline_mode<synchronous>, transform_indices = @transform_10, window_bounds = array<i64: 3, 32, 32>}, {pipeline_mode = #tpu.pipeline_mode<synchronous>, transform_indices = @transform_11, window_bounds = array<i64: 3, 1, 32>}, {pipeline_mode = #tpu.pipeline_mode<synchronous>, transform_indices = @transform_12, window_bounds = array<i64: 3, 1, 32>}, {transform_indices = @transform_13, window_bounds = array<i64: 32, 256>}, {transform_indices = @transform_14, window_bounds = array<i64: 32, 256>}, {transform_indices = @transform_15, window_bounds = array<i64: 16, 256>}, {transform_indices = @transform_16, window_bounds = array<i64: 1, 256>}, {transform_indices = @transform_17, window_bounds = array<i64: 16, 256>}, {pipeline_mode = #tpu.pipeline_mode<synchronous>, transform_indices = @transform_18, window_bounds = array<i64: 16, 32>}]} {
    %c0_i32 = arith.constant 0 : i32
    %0 = arith.cmpi eq, %arg0, %c0_i32 : i32
    %1 = arith.extui %0 : i1 to i32
    %c0_i32_0 = arith.constant 0 : i32
    %2 = arith.cmpi ne, %1, %c0_i32_0 : i32
    scf.if %2 {
      %c0_19 = arith.constant 0 : index
      %c0_20 = arith.constant 0 : index
      %21 = vector.load %arg1[%c0_19, %c0_20] : memref<16x16xbf16, #tpu.memory_space<vmem>>, vector<16x16xbf16>
      %c0_21 = arith.constant 0 : index
      %c0_22 = arith.constant 0 : index
      %22 = vector.load %arg2[%c0_21, %c0_22] : memref<16x32xf32, #tpu.memory_space<vmem>>, vector<16x32xf32>
      %c0_23 = arith.constant 0 : index
      %c0_24 = arith.constant 0 : index
      %c0_25 = arith.constant 0 : index
      %23 = vector.load %arg3[%c0_23, %c0_24, %c0_25] : memref<16x8x32xbf16, #tpu.memory_space<vmem>>, vector<16x8x32xbf16>
      %c0_26 = arith.constant 0 : index
      %c0_27 = arith.constant 0 : index
      %24 = vector.load %arg4[%c0_26, %c0_27] : memref<16x8xf32, #tpu.memory_space<vmem>>, vector<16x8xf32>
      %25 = arith.truncf %22 : vector<16x32xf32> to vector<16x32xbf16>
      %c0_28 = arith.constant 0 : index
      %c0_29 = arith.constant 0 : index
      %26 = vector.load %arg5[%c0_28, %c0_29] : memref<32x32xbf16, #tpu.memory_space<vmem>>, vector<32x32xbf16>
      %cst_30 = arith.constant dense<0.000000e+00> : vector<16x32xf32>
      %27 = tpu.matmul %25, %26, %cst_30 {dimension_numbers = #tpu.dot_dimension_numbers<[1], [0], [0], [1], [0, 0, 1, 1], [], []>} : vector<16x32xbf16>, vector<32x32xbf16>, vector<16x32xf32> -> vector<16x32xf32>
      %c0_31 = arith.constant 0 : index
      %c0_32 = arith.constant 0 : index
      %28 = vector.load %arg7[%c0_31, %c0_32] : memref<1x32xf32, #tpu.memory_space<vmem>>, vector<1x32xf32>
      %29 = vector.broadcast %28 : vector<1x32xf32> to vector<16x32xf32>
      %30 = arith.addf %27, %29 : vector<16x32xf32>
      %31 = vector.shape_cast %23 : vector<16x8x32xbf16> to vector<128x32xbf16>
      %c0_33 = arith.constant 0 : index
      %c0_34 = arith.constant 0 : index
      %32 = vector.load %arg6[%c0_33, %c0_34] : memref<32x32xbf16, #tpu.memory_space<vmem>>, vector<32x32xbf16>
      %cst_35 = arith.constant dense<0.000000e+00> : vector<128x32xf32>
      %33 = tpu.matmul %31, %32, %cst_35 {dimension_numbers = #tpu.dot_dimension_numbers<[1], [0], [0], [1], [0, 0, 1, 1], [], []>} : vector<128x32xbf16>, vector<32x32xbf16>, vector<128x32xf32> -> vector<128x32xf32>
      %34 = vector.shape_cast %33 : vector<128x32xf32> to vector<16x8x32xf32>
      %35 = vector.shape_cast %30 : vector<16x32xf32> to vector<16x1x32xf32>
      %36 = vector.broadcast %35 : vector<16x1x32xf32> to vector<16x8x32xf32>
      %37 = arith.addf %34, %36 : vector<16x8x32xf32>
      %38 = math.tanh %37 : vector<16x8x32xf32>
      %c0_36 = arith.constant 0 : index
      %c0_37 = arith.constant 0 : index
      %39 = vector.load %arg8[%c0_36, %c0_37] : memref<1x32xf32, #tpu.memory_space<vmem>>, vector<1x32xf32>
      %40 = vector.shape_cast %39 : vector<1x32xf32> to vector<1x1x32xf32>
      %41 = vector.broadcast %40 : vector<1x1x32xf32> to vector<16x8x32xf32>
      %42 = arith.mulf %38, %41 : vector<16x8x32xf32>
      %cst_38 = arith.constant dense<0.000000e+00> : vector<16x8xf32>
      %43 = vector.multi_reduction <add>, %42, %cst_38 [2] : vector<16x8x32xf32> to vector<16x8xf32>
      %cst_39 = arith.constant 0.000000e+00 : f32
      %44 = vector.broadcast %cst_39 : f32 to vector<16x8xf32>
      %45 = arith.cmpf oeq, %24, %44 : vector<16x8xf32>
      %cst_40 = arith.constant -1.000000e+10 : f32
      %46 = vector.broadcast %cst_40 : f32 to vector<16x8xf32>
      %47 = arith.select %45, %46, %43 : vector<16x8xi1>, vector<16x8xf32>
      %cst_41 = arith.constant dense<0xFF800000> : vector<16xf32>
      %48 = vector.multi_reduction <maximumf>, %47, %cst_41 [1] : vector<16x8xf32> to vector<16xf32>
      %49 = vector.shape_cast %48 : vector<16xf32> to vector<16x1xf32>
      %50 = vector.broadcast %49 : vector<16x1xf32> to vector<16x8xf32>
      %51 = arith.subf %47, %50 : vector<16x8xf32>
      %52 = math.exp %51 : vector<16x8xf32>
      %cst_42 = arith.constant dense<0.000000e+00> : vector<16xf32>
      %53 = vector.multi_reduction <add>, %52, %cst_42 [1] : vector<16x8xf32> to vector<16xf32>
      %54 = vector.shape_cast %53 : vector<16xf32> to vector<16x1xf32>
      %55 = tpu.reciprocal %54 {approx = true} : vector<16x1xf32> -> vector<16x1xf32>
      %56 = vector.broadcast %55 : vector<16x1xf32> to vector<16x8xf32>
      %57 = arith.mulf %52, %56 : vector<16x8xf32>
      %58 = vector.shape_cast %57 : vector<16x8xf32> to vector<16x1x8xf32>
      %59 = arith.truncf %58 : vector<16x1x8xf32> to vector<16x1x8xbf16>
      "tpu.trace_start"() <{level = 10 : i32, message = "bqs,bsd->bqd"}> : () -> ()
      %cst_43 = arith.constant dense<0.000000e+00> : vector<16x1x32xf32>
      %60 = tpu.matmul %59, %23, %cst_43 {dimension_numbers = #tpu.dot_dimension_numbers<[2], [1], [1], [2], [0, 0, 0, 1, 1, 2], [0], [0]>} : vector<16x1x8xbf16>, vector<16x8x32xbf16>, vector<16x1x32xf32> -> vector<16x1x32xf32>
      "tpu.trace_stop"() : () -> ()
      %c0_44 = arith.constant 0 : index
      %c0_45 = arith.constant 0 : index
      %c0_46 = arith.constant 0 : index
      %61 = vector.load %arg21[%c0_44, %c0_45, %c0_46] : memref<16x1x32xf32, #tpu.memory_space<vmem>>, vector<16x1x32xf32>
      tpu.vector_store %arg21[%c0_44, %c0_45, %c0_46], %60 {strides = array<i32>} : memref<16x1x32xf32, #tpu.memory_space<vmem>>, vector<16x1x32xf32>,
      %c0_47 = arith.constant 0 : index
      %c0_48 = arith.constant 0 : index
      %c0_49 = arith.constant 0 : index
      %62 = vector.load %arg21[%c0_47, %c0_48, %c0_49] : memref<16x1x32xf32, #tpu.memory_space<vmem>>, vector<16x1x32xf32>
      %63 = vector.shape_cast %62 : vector<16x1x32xf32> to vector<16x32xf32>
      %64 = arith.truncf %63 : vector<16x32xf32> to vector<16x32xbf16>
      %c0_50 = arith.constant 0 : index
      %c0_51 = arith.constant 0 : index
      %c0_52 = arith.constant 0 : index
      %65 = vector.load %arg9[%c0_50, %c0_51, %c0_52] : memref<3x16x32xbf16, #tpu.memory_space<vmem>>, vector<1x16x32xbf16>
      %66 = vector.shape_cast %65 : vector<1x16x32xbf16> to vector<16x32xbf16>
      %cst_53 = arith.constant dense<0.000000e+00> : vector<16x32xf32>
      %67 = tpu.matmul %21, %66, %cst_53 {dimension_numbers = #tpu.dot_dimension_numbers<[1], [0], [0], [1], [0, 0, 1, 1], [], []>} : vector<16x16xbf16>, vector<16x32xbf16>, vector<16x32xf32> -> vector<16x32xf32>
      %c0_54 = arith.constant 0 : index
      %c0_55 = arith.constant 0 : index
      %c0_56 = arith.constant 0 : index
      %68 = vector.load %arg10[%c0_54, %c0_55, %c0_56] : memref<3x32x32xbf16, #tpu.memory_space<vmem>>, vector<1x32x32xbf16>
      %69 = vector.shape_cast %68 : vector<1x32x32xbf16> to vector<32x32xbf16>
      %cst_57 = arith.constant dense<0.000000e+00> : vector<16x32xf32>
      %70 = tpu.matmul %64, %69, %cst_57 {dimension_numbers = #tpu.dot_dimension_numbers<[1], [0], [0], [1], [0, 0, 1, 1], [], []>} : vector<16x32xbf16>, vector<32x32xbf16>, vector<16x32xf32> -> vector<16x32xf32>
      %71 = arith.addf %67, %70 : vector<16x32xf32>
      %c0_58 = arith.constant 0 : index
      %c0_59 = arith.constant 0 : index
      %c0_60 = arith.constant 0 : index
      %72 = vector.load %arg12[%c0_58, %c0_59, %c0_60] : memref<3x1x32xf32, #tpu.memory_space<vmem>>, vector<1x1x32xf32>
      %73 = vector.shape_cast %72 : vector<1x1x32xf32> to vector<1x32xf32>
      %74 = vector.broadcast %73 : vector<1x32xf32> to vector<16x32xf32>
      %75 = arith.addf %71, %74 : vector<16x32xf32>
      %c0_61 = arith.constant 0 : index
      %c0_62 = arith.constant 0 : index
      %c0_63 = arith.constant 0 : index
      %76 = vector.load %arg11[%c0_61, %c0_62, %c0_63] : memref<3x32x32xbf16, #tpu.memory_space<vmem>>, vector<1x32x32xbf16>
      %77 = vector.shape_cast %76 : vector<1x32x32xbf16> to vector<32x32xbf16>
      %cst_64 = arith.constant dense<0.000000e+00> : vector<16x32xf32>
      %78 = tpu.matmul %25, %77, %cst_64 {dimension_numbers = #tpu.dot_dimension_numbers<[1], [0], [0], [1], [0, 0, 1, 1], [], []>} : vector<16x32xbf16>, vector<32x32xbf16>, vector<16x32xf32> -> vector<16x32xf32>
      %c0_65 = arith.constant 0 : index
      %c0_66 = arith.constant 0 : index
      %c0_67 = arith.constant 0 : index
      %79 = vector.load %arg13[%c0_65, %c0_66, %c0_67] : memref<3x1x32xf32, #tpu.memory_space<vmem>>, vector<1x1x32xf32>
      %80 = vector.shape_cast %79 : vector<1x1x32xf32> to vector<1x32xf32>
      %81 = vector.broadcast %80 : vector<1x32xf32> to vector<16x32xf32>
      %82 = arith.addf %78, %81 : vector<16x32xf32>
      %83 = arith.addf %75, %82 : vector<16x32xf32>
      %84 = arith.negf %83 : vector<16x32xf32>
      %85 = math.exp %84 : vector<16x32xf32>
      %cst_68 = arith.constant 1.000000e+00 : f32
      %86 = vector.broadcast %cst_68 : f32 to vector<16x32xf32>
      %87 = arith.addf %86, %85 : vector<16x32xf32>
      %88 = arith.divf %86, %87 : vector<16x32xf32>
      %c1 = arith.constant 1 : index
      %c0_69 = arith.constant 0 : index
      %c0_70 = arith.constant 0 : index
      %89 = vector.load %arg9[%c1, %c0_69, %c0_70] : memref<3x16x32xbf16, #tpu.memory_space<vmem>>, vector<1x16x32xbf16>
      %90 = vector.shape_cast %89 : vector<1x16x32xbf16> to vector<16x32xbf16>
      %cst_71 = arith.constant dense<0.000000e+00> : vector<16x32xf32>
      %91 = tpu.matmul %21, %90, %cst_71 {dimension_numbers = #tpu.dot_dimension_numbers<[1], [0], [0], [1], [0, 0, 1, 1], [], []>} : vector<16x16xbf16>, vector<16x32xbf16>, vector<16x32xf32> -> vector<16x32xf32>
      %c1_72 = arith.constant 1 : index
      %c0_73 = arith.constant 0 : index
      %c0_74 = arith.constant 0 : index
      %92 = vector.load %arg10[%c1_72, %c0_73, %c0_74] : memref<3x32x32xbf16, #tpu.memory_space<vmem>>, vector<1x32x32xbf16>
      %93 = vector.shape_cast %92 : vector<1x32x32xbf16> to vector<32x32xbf16>
      %cst_75 = arith.constant dense<0.000000e+00> : vector<16x32xf32>
      %94 = tpu.matmul %64, %93, %cst_75 {dimension_numbers = #tpu.dot_dimension_numbers<[1], [0], [0], [1], [0, 0, 1, 1], [], []>} : vector<16x32xbf16>, vector<32x32xbf16>, vector<16x32xf32> -> vector<16x32xf32>
      %95 = arith.addf %91, %94 : vector<16x32xf32>
      %c1_76 = arith.constant 1 : index
      %c0_77 = arith.constant 0 : index
      %c0_78 = arith.constant 0 : index
      %96 = vector.load %arg12[%c1_76, %c0_77, %c0_78] : memref<3x1x32xf32, #tpu.memory_space<vmem>>, vector<1x1x32xf32>
      %97 = vector.shape_cast %96 : vector<1x1x32xf32> to vector<1x32xf32>
      %98 = vector.broadcast %97 : vector<1x32xf32> to vector<16x32xf32>
      %99 = arith.addf %95, %98 : vector<16x32xf32>
      %c1_79 = arith.constant 1 : index
      %c0_80 = arith.constant 0 : index
      %c0_81 = arith.constant 0 : index
      %100 = vector.load %arg11[%c1_79, %c0_80, %c0_81] : memref<3x32x32xbf16, #tpu.memory_space<vmem>>, vector<1x32x32xbf16>
      %101 = vector.shape_cast %100 : vector<1x32x32xbf16> to vector<32x32xbf16>
      %cst_82 = arith.constant dense<0.000000e+00> : vector<16x32xf32>
      %102 = tpu.matmul %25, %101, %cst_82 {dimension_numbers = #tpu.dot_dimension_numbers<[1], [0], [0], [1], [0, 0, 1, 1], [], []>} : vector<16x32xbf16>, vector<32x32xbf16>, vector<16x32xf32> -> vector<16x32xf32>
      %c1_83 = arith.constant 1 : index
      %c0_84 = arith.constant 0 : index
      %c0_85 = arith.constant 0 : index
      %103 = vector.load %arg13[%c1_83, %c0_84, %c0_85] : memref<3x1x32xf32, #tpu.memory_space<vmem>>, vector<1x1x32xf32>
      %104 = vector.shape_cast %103 : vector<1x1x32xf32> to vector<1x32xf32>
      %105 = vector.broadcast %104 : vector<1x32xf32> to vector<16x32xf32>
      %106 = arith.addf %102, %105 : vector<16x32xf32>
      %107 = arith.addf %99, %106 : vector<16x32xf32>
      %108 = arith.negf %107 : vector<16x32xf32>
      %109 = math.exp %108 : vector<16x32xf32>
      %cst_86 = arith.constant 1.000000e+00 : f32
      %110 = vector.broadcast %cst_86 : f32 to vector<16x32xf32>
      %111 = arith.addf %110, %109 : vector<16x32xf32>
      %112 = arith.divf %110, %111 : vector<16x32xf32>
      %c2 = arith.constant 2 : index
      %c0_87 = arith.constant 0 : index
      %c0_88 = arith.constant 0 : index
      %113 = vector.load %arg9[%c2, %c0_87, %c0_88] : memref<3x16x32xbf16, #tpu.memory_space<vmem>>, vector<1x16x32xbf16>
      %114 = vector.shape_cast %113 : vector<1x16x32xbf16> to vector<16x32xbf16>
      %cst_89 = arith.constant dense<0.000000e+00> : vector<16x32xf32>
      %115 = tpu.matmul %21, %114, %cst_89 {dimension_numbers = #tpu.dot_dimension_numbers<[1], [0], [0], [1], [0, 0, 1, 1], [], []>} : vector<16x16xbf16>, vector<16x32xbf16>, vector<16x32xf32> -> vector<16x32xf32>
      %c2_90 = arith.constant 2 : index
      %c0_91 = arith.constant 0 : index
      %c0_92 = arith.constant 0 : index
      %116 = vector.load %arg10[%c2_90, %c0_91, %c0_92] : memref<3x32x32xbf16, #tpu.memory_space<vmem>>, vector<1x32x32xbf16>
      %117 = vector.shape_cast %116 : vector<1x32x32xbf16> to vector<32x32xbf16>
      %cst_93 = arith.constant dense<0.000000e+00> : vector<16x32xf32>
      %118 = tpu.matmul %64, %117, %cst_93 {dimension_numbers = #tpu.dot_dimension_numbers<[1], [0], [0], [1], [0, 0, 1, 1], [], []>} : vector<16x32xbf16>, vector<32x32xbf16>, vector<16x32xf32> -> vector<16x32xf32>
      %119 = arith.addf %115, %118 : vector<16x32xf32>
      %c2_94 = arith.constant 2 : index
      %c0_95 = arith.constant 0 : index
      %c0_96 = arith.constant 0 : index
      %120 = vector.load %arg12[%c2_94, %c0_95, %c0_96] : memref<3x1x32xf32, #tpu.memory_space<vmem>>, vector<1x1x32xf32>
      %121 = vector.shape_cast %120 : vector<1x1x32xf32> to vector<1x32xf32>
      %122 = vector.broadcast %121 : vector<1x32xf32> to vector<16x32xf32>
      %123 = arith.addf %119, %122 : vector<16x32xf32>
      %c2_97 = arith.constant 2 : index
      %c0_98 = arith.constant 0 : index
      %c0_99 = arith.constant 0 : index
      %124 = vector.load %arg11[%c2_97, %c0_98, %c0_99] : memref<3x32x32xbf16, #tpu.memory_space<vmem>>, vector<1x32x32xbf16>
      %125 = vector.shape_cast %124 : vector<1x32x32xbf16> to vector<32x32xbf16>
      %cst_100 = arith.constant dense<0.000000e+00> : vector<16x32xf32>
      %126 = tpu.matmul %25, %125, %cst_100 {dimension_numbers = #tpu.dot_dimension_numbers<[1], [0], [0], [1], [0, 0, 1, 1], [], []>} : vector<16x32xbf16>, vector<32x32xbf16>, vector<16x32xf32> -> vector<16x32xf32>
      %c2_101 = arith.constant 2 : index
      %c0_102 = arith.constant 0 : index
      %c0_103 = arith.constant 0 : index
      %127 = vector.load %arg13[%c2_101, %c0_102, %c0_103] : memref<3x1x32xf32, #tpu.memory_space<vmem>>, vector<1x1x32xf32>
      %128 = vector.shape_cast %127 : vector<1x1x32xf32> to vector<1x32xf32>
      %129 = vector.broadcast %128 : vector<1x32xf32> to vector<16x32xf32>
      %130 = arith.addf %126, %129 : vector<16x32xf32>
      %131 = arith.mulf %88, %130 : vector<16x32xf32>
      %132 = arith.addf %123, %131 : vector<16x32xf32>
      %133 = math.tanh %132 : vector<16x32xf32>
      %cst_104 = arith.constant 1.000000e+00 : f32
      %134 = vector.broadcast %cst_104 : f32 to vector<16x32xf32>
      %135 = arith.subf %134, %112 : vector<16x32xf32>
      %136 = arith.mulf %135, %133 : vector<16x32xf32>
      %137 = arith.mulf %112, %22 : vector<16x32xf32>
      %138 = arith.addf %136, %137 : vector<16x32xf32>
      %c0_105 = arith.constant 0 : index
      %c0_106 = arith.constant 0 : index
      %139 = vector.load %arg20[%c0_105, %c0_106] : memref<16x32xf32, #tpu.memory_space<vmem>>, vector<16x32xf32>
      tpu.vector_store %arg20[%c0_105, %c0_106], %138 {strides = array<i32>} : memref<16x32xf32, #tpu.memory_space<vmem>>, vector<16x32xf32>,
      %c0_107 = arith.constant 0 : index
      %c0_108 = arith.constant 0 : index
      %140 = vector.load %arg19[%c0_107, %c0_108] : memref<16x32xf32, #tpu.memory_space<vmem>>, vector<16x32xf32>
      tpu.vector_store %arg19[%c0_107, %c0_108], %138 {strides = array<i32>} : memref<16x32xf32, #tpu.memory_space<vmem>>, vector<16x32xf32>,
    } else {
    }
    %c0 = arith.constant 0 : index
    %c0_1 = arith.constant 0 : index
    %3 = vector.load %arg20[%c0, %c0_1] : memref<16x32xf32, #tpu.memory_space<vmem>>, vector<16x32xf32>
    %4 = arith.truncf %3 : vector<16x32xf32> to vector<16x32xbf16>
    %c0_2 = arith.constant 0 : index
    %c0_3 = arith.constant 0 : index
    %c0_4 = arith.constant 0 : index
    %5 = vector.load %arg21[%c0_2, %c0_3, %c0_4] : memref<16x1x32xf32, #tpu.memory_space<vmem>>, vector<16x1x32xf32>
    %6 = vector.shape_cast %5 : vector<16x1x32xf32> to vector<16x32xf32>
    %7 = arith.truncf %6 : vector<16x32xf32> to vector<16x32xbf16>
    %c0_5 = arith.constant 0 : index
    %c0_6 = arith.constant 0 : index
    %8 = vector.load %arg14[%c0_5, %c0_6] : memref<32x256xbf16, #tpu.memory_space<vmem>>, vector<32x256xbf16>
    %cst = arith.constant dense<0.000000e+00> : vector<16x256xf32>
    %9 = tpu.matmul %4, %8, %cst {dimension_numbers = #tpu.dot_dimension_numbers<[1], [0], [0], [1], [0, 0, 1, 1], [], []>} : vector<16x32xbf16>, vector<32x256xbf16>, vector<16x256xf32> -> vector<16x256xf32>
    %c0_7 = arith.constant 0 : index
    %c0_8 = arith.constant 0 : index
    %10 = vector.load %arg15[%c0_7, %c0_8] : memref<32x256xbf16, #tpu.memory_space<vmem>>, vector<32x256xbf16>
    %cst_9 = arith.constant dense<0.000000e+00> : vector<16x256xf32>
    %11 = tpu.matmul %7, %10, %cst_9 {dimension_numbers = #tpu.dot_dimension_numbers<[1], [0], [0], [1], [0, 0, 1, 1], [], []>} : vector<16x32xbf16>, vector<32x256xbf16>, vector<16x256xf32> -> vector<16x256xf32>
    %12 = arith.addf %9, %11 : vector<16x256xf32>
    %c0_10 = arith.constant 0 : index
    %c0_11 = arith.constant 0 : index
    %13 = vector.load %arg1[%c0_10, %c0_11] : memref<16x16xbf16, #tpu.memory_space<vmem>>, vector<16x16xbf16>
    %c0_12 = arith.constant 0 : index
    %c0_13 = arith.constant 0 : index
    %14 = vector.load %arg16[%c0_12, %c0_13] : memref<16x256xbf16, #tpu.memory_space<vmem>>, vector<16x256xbf16>
    %cst_14 = arith.constant dense<0.000000e+00> : vector<16x256xf32>
    %15 = tpu.matmul %13, %14, %cst_14 {dimension_numbers = #tpu.dot_dimension_numbers<[1], [0], [0], [1], [0, 0, 1, 1], [], []>} : vector<16x16xbf16>, vector<16x256xbf16>, vector<16x256xf32> -> vector<16x256xf32>
    %16 = arith.addf %12, %15 : vector<16x256xf32>
    %c0_15 = arith.constant 0 : index
    %c0_16 = arith.constant 0 : index
    %17 = vector.load %arg17[%c0_15, %c0_16] : memref<1x256xf32, #tpu.memory_space<vmem>>, vector<1x256xf32>
    %18 = vector.broadcast %17 : vector<1x256xf32> to vector<16x256xf32>
    %19 = arith.addf %16, %18 : vector<16x256xf32>
    %c0_17 = arith.constant 0 : index
    %c0_18 = arith.constant 0 : index
    %20 = vector.load %arg18[%c0_17, %c0_18] : memref<16x256xf32, #tpu.memory_space<vmem>>, vector<16x256xf32>
    tpu.vector_store %arg18[%c0_17, %c0_18], %19 {strides = array<i32>} : memref<16x256xf32, #tpu.memory_space<vmem>>, vector<16x256xf32>,
    return
  }
  func.func @transform_0(%arg0: i32) -> (i32, i32) {
    %c0_i32 = arith.constant 0 : i32
    %c0_i32_0 = arith.constant 0 : i32
    %c0_i32_1 = arith.constant 0 : i32
    return %c0_i32, %c0_i32_0 : i32, i32
  }
  func.func @transform_1(%arg0: i32) -> (i32, i32) {
    %c0_i32 = arith.constant 0 : i32
    %c0_i32_0 = arith.constant 0 : i32
    %c0_i32_1 = arith.constant 0 : i32
    return %c0_i32, %c0_i32_0 : i32, i32
  }
  func.func @transform_2(%arg0: i32) -> (i32, i32, i32) {
    %c0_i32 = arith.constant 0 : i32
    %c0_i32_0 = arith.constant 0 : i32
    %c0_i32_1 = arith.constant 0 : i32
    %c0_i32_2 = arith.constant 0 : i32
    return %c0_i32, %c0_i32_0, %c0_i32_1 : i32, i32, i32
  }
  func.func @transform_3(%arg0: i32) -> (i32, i32) {
    %c0_i32 = arith.constant 0 : i32
    %c0_i32_0 = arith.constant 0 : i32
    %c0_i32_1 = arith.constant 0 : i32
    return %c0_i32, %c0_i32_0 : i32, i32
  }
  func.func @transform_4(%arg0: i32) -> (i32, i32) {
    %c0_i32 = arith.constant 0 : i32
    %c0_i32_0 = arith.constant 0 : i32
    %c0_i32_1 = arith.constant 0 : i32
    return %c0_i32, %c0_i32_0 : i32, i32
  }
  func.func @transform_5(%arg0: i32) -> (i32, i32) {
    %c0_i32 = arith.constant 0 : i32
    %c0_i32_0 = arith.constant 0 : i32
    %c0_i32_1 = arith.constant 0 : i32
    return %c0_i32, %c0_i32_0 : i32, i32
  }
  func.func @transform_6(%arg0: i32) -> (i32, i32) {
    %c0_i32 = arith.constant 0 : i32
    %c0_i32_0 = arith.constant 0 : i32
    %c0_i32_1 = arith.constant 0 : i32
    return %c0_i32, %c0_i32_0 : i32, i32
  }
  func.func @transform_7(%arg0: i32) -> (i32, i32) {
    %c0_i32 = arith.constant 0 : i32
    %c0_i32_0 = arith.constant 0 : i32
    %c0_i32_1 = arith.constant 0 : i32
    return %c0_i32, %c0_i32_0 : i32, i32
  }
  func.func @transform_8(%arg0: i32) -> (i32, i32, i32) {
    %c0_i32 = arith.constant 0 : i32
    %c0_i32_0 = arith.constant 0 : i32
    %c0_i32_1 = arith.constant 0 : i32
    %c0_i32_2 = arith.constant 0 : i32
    return %c0_i32, %c0_i32_0, %c0_i32_1 : i32, i32, i32
  }
  func.func @transform_9(%arg0: i32) -> (i32, i32, i32) {
    %c0_i32 = arith.constant 0 : i32
    %c0_i32_0 = arith.constant 0 : i32
    %c0_i32_1 = arith.constant 0 : i32
    %c0_i32_2 = arith.constant 0 : i32
    return %c0_i32, %c0_i32_0, %c0_i32_1 : i32, i32, i32
  }
  func.func @transform_10(%arg0: i32) -> (i32, i32, i32) {
    %c0_i32 = arith.constant 0 : i32
    %c0_i32_0 = arith.constant 0 : i32
    %c0_i32_1 = arith.constant 0 : i32
    %c0_i32_2 = arith.constant 0 : i32
    return %c0_i32, %c0_i32_0, %c0_i32_1 : i32, i32, i32
  }
  func.func @transform_11(%arg0: i32) -> (i32, i32, i32) {
    %c0_i32 = arith.constant 0 : i32
    %c0_i32_0 = arith.constant 0 : i32
    %c0_i32_1 = arith.constant 0 : i32
    %c0_i32_2 = arith.constant 0 : i32
    return %c0_i32, %c0_i32_0, %c0_i32_1 : i32, i32, i32
  }
  func.func @transform_12(%arg0: i32) -> (i32, i32, i32) {
    %c0_i32 = arith.constant 0 : i32
    %c0_i32_0 = arith.constant 0 : i32
    %c0_i32_1 = arith.constant 0 : i32
    %c0_i32_2 = arith.constant 0 : i32
    return %c0_i32, %c0_i32_0, %c0_i32_1 : i32, i32, i32
  }
  func.func @transform_13(%arg0: i32) -> (i32, i32) {
    %c0_i32 = arith.constant 0 : i32
    %c0_i32_0 = arith.constant 0 : i32
    return %c0_i32, %arg0 : i32, i32
  }
  func.func @transform_14(%arg0: i32) -> (i32, i32) {
    %c0_i32 = arith.constant 0 : i32
    %c0_i32_0 = arith.constant 0 : i32
    return %c0_i32, %arg0 : i32, i32
  }
  func.func @transform_15(%arg0: i32) -> (i32, i32) {
    %c0_i32 = arith.constant 0 : i32
    %c0_i32_0 = arith.constant 0 : i32
    return %c0_i32, %arg0 : i32, i32
  }
  func.func @transform_16(%arg0: i32) -> (i32, i32) {
    %c0_i32 = arith.constant 0 : i32
    %c0_i32_0 = arith.constant 0 : i32
    return %c0_i32, %arg0 : i32, i32
  }
  func.func @transform_17(%arg0: i32) -> (i32, i32) {
    %c0_i32 = arith.constant 0 : i32
    %c0_i32_0 = arith.constant 0 : i32
    return %c0_i32, %arg0 : i32, i32
  }
  func.func @transform_18(%arg0: i32) -> (i32, i32) {
    %c0_i32 = arith.constant 0 : i32
    %c0_i32_0 = arith.constant 0 : i32
    %c0_i32_1 = arith.constant 0 : i32
    return %c0_i32, %c0_i32_0 : i32, i32
  }
}

</mosaic_0001>

<llo_original>
// kernel: decoder_forward.1
$region0: #{decoder_forward.1}
  #allocation0 [shape = 'u32[]', space=smem, size = 0x4, offset = 0x4, fixed_abs, tag = 'smem constant byte address 0x4 - core index']
  #allocation1 [shape = 'u32[72,128]{1,0:T(1,128)}', space=vmem, size = 0x9000, scoped, tag = 'internal scratch']
  #allocation2 [shape = 'f32[16,32]{1,0:T(8,128)}', space=vmem, size = 0x2000, scoped, tag = 'scratch operand']
  #allocation3 [shape = 'f32[16,1,32]{2,1,0:T(1,128)}', space=vmem, size = 0x2000, scoped, tag = 'scratch operand']
  %s0 = inlined_call_operand.vmem [shape: bf16[16,16], index: 0, kind: input, shape index: {}]
  %s1 = inlined_call_operand.vmem [shape: f32[16,32], index: 1, kind: input, shape index: {}, may-alias: {1,18}]
  %s2 = inlined_call_operand.vmem [shape: bf16[16,8,32], index: 2, kind: input, shape index: {}]
  %s3 = inlined_call_operand.vmem [shape: f32[16,8], index: 3, kind: input, shape index: {}]
  %s4 = inlined_call_operand.hbm [shape: bf16[32,32], index: 4, kind: input, shape index: {}]
  %s5 = inlined_call_operand.hbm [shape: bf16[32,32], index: 5, kind: input, shape index: {}]
  %s6 = inlined_call_operand.hbm [shape: f32[1,32], index: 6, kind: input, shape index: {}]
  %s7 = inlined_call_operand.vmem [shape: f32[1,32], index: 7, kind: input, shape index: {}]
  %s8 = inlined_call_operand.vmem [shape: bf16[3,16,32], index: 8, kind: input, shape index: {}]
  %s9 = inlined_call_operand.vmem [shape: bf16[3,32,32], index: 9, kind: input, shape index: {}]
  %s10 = inlined_call_operand.vmem [shape: bf16[3,32,32], index: 10, kind: input, shape index: {}]
  %s11 = inlined_call_operand.hbm [shape: f32[3,1,32], index: 11, kind: input, shape index: {}]
  %s12 = inlined_call_operand.hbm [shape: f32[3,1,32], index: 12, kind: input, shape index: {}]
  %s13 = inlined_call_operand.vmem [shape: bf16[32,256], index: 13, kind: input, shape index: {}]
  %s14 = inlined_call_operand.vmem [shape: bf16[32,256], index: 14, kind: input, shape index: {}]
  %s15 = inlined_call_operand.vmem [shape: bf16[16,256], index: 15, kind: input, shape index: {}]
  %s16 = inlined_call_operand.hbm [shape: f32[1,256], index: 16, kind: input, shape index: {}]
  %s17 = inlined_call_operand.vmem [shape: f32[16,256], index: 17, kind: output, shape index: {0}]
  %s18 = inlined_call_operand.vmem [shape: f32[16,32], index: 18, kind: output, shape index: {1}, may-alias: {1,18}]
  %19 = xla_tuple %s17, %s18
  %s20 = sld [smem:[#allocation0]]
  $region114: #{decoder_forward.1} parent=0
    _
  %s22 = ssub.s32 1, %s20
  %s23 = scalar_select 0, %s22, %s20
  $region1: #{decoder_forward.1} parent=0
    #allocation4 [shape = 'u8[8192]{0}', space=vmem, size = 0x2000, scoped, tag = 'input window, operand 4, single buffered']
    #allocation5 [shape = 's32[1]{0}', space=sflag, size = 0x4, scoped, tag = 'scoped memory for decoder_forward.1']
    #allocation6 [shape = 'u8[8192]{0}', space=vmem, size = 0x2000, scoped, tag = 'input window, operand 5, single buffered']
    #allocation7 [shape = 's32[1]{0}', space=sflag, size = 0x4, scoped, tag = 'scoped memory for decoder_forward.1']
    #allocation8 [shape = 'u8[512]{0}', space=vmem, size = 0x400, scoped, tag = 'input window, operand 6, single buffered']
    #allocation9 [shape = 'u8[1536]{0}', space=vmem, size = 0x800, scoped, tag = 'input window, operand 11, single buffered']
    #allocation10 [shape = 's32[1]{0}', space=sflag, size = 0x4, scoped, tag = 'scoped memory for decoder_forward.1']
    #allocation11 [shape = 'u8[1536]{0}', space=vmem, size = 0x800, scoped, tag = 'input window, operand 12, single buffered']
    #allocation12 [shape = 'u8[1024]{0}', space=vmem, size = 0x400, scoped, tag = 'input window, operand 16, single buffered']
    #allocation13 [shape = 's32[1]{0}', space=sflag, size = 0x4, scoped, tag = 'scoped memory for decoder_forward.1']
    %24 = vsyncpa [#allocation5], 0
    %25 = vsyncpa [#allocation7], 0
    %26 = vsyncpa [#allocation10], 0
    %27 = vsyncpa [#allocation13], 0
    // Predicated region
    $region2: #{decoder_forward.1} parent=1 // pred_check
      _
    $region3: #{decoder_forward.1} parent=1 // pred_check_branch
      %29 = sbr.rel (0) target = $region5
    $region4: #{decoder_forward.1} parent=1 // pred_region
      _
    $region5: #{decoder_forward.1} parent=1 // pred_fallthru
      _
    // Predicated region
    $region6: #{decoder_forward.1} parent=1 // pred_check
      _
    $region7: #{decoder_forward.1} parent=1 // pred_check_branch
      %31 = sbr.rel (0) target = $region9
    $region8: #{decoder_forward.1} parent=1 // pred_region
      _
    $region9: #{decoder_forward.1} parent=1 // pred_fallthru
      _
    // Predicated region
    $region10: #{decoder_forward.1} parent=1 // pred_check
      _
    $region11: #{decoder_forward.1} parent=1 // pred_check_branch
      %33 = sbr.rel (0) target = $region13
    $region12: #{decoder_forward.1} parent=1 // pred_region
      _
    $region13: #{decoder_forward.1} parent=1 // pred_fallthru
      _
    // Predicated region
    $region14: #{decoder_forward.1} parent=1 // pred_check
      _
    $region15: #{decoder_forward.1} parent=1 // pred_check_branch
      %35 = sbr.rel (0) target = $region17
    $region16: #{decoder_forward.1} parent=1 // pred_region
      _
    $region17: #{decoder_forward.1} parent=1 // pred_fallthru
      _
    // Predicated region
    $region18: #{decoder_forward.1} parent=1 // pred_check
      _
    $region19: #{decoder_forward.1} parent=1 // pred_check_branch
      %37 = sbr.rel (0) target = $region21
    $region20: #{decoder_forward.1} parent=1 // pred_region
      %39 = vsyncadd [#allocation5], 0
      %s40 = sshll.u32 %s4, 4
      %s41 = int_to_ptr.hbm [resolvable:$true] %s40
      %s42 = sshll.u32 [#allocation4], 4
      %s43 = int_to_ptr.vmem [resolvable:$true] %s42
      %48 = dma.hbm_to_vmem [thread:$0]  %s41, 256, %s43, [#allocation5], 64, 64, 4
    $region21: #{decoder_forward.1} parent=1 // pred_fallthru
      _
    // Predicated region
    $region22: #{decoder_forward.1} parent=1 // pred_check
      _
    $region23: #{decoder_forward.1} parent=1 // pred_check_branch
      %50 = sbr.rel (0) target = $region25
    $region24: #{decoder_forward.1} parent=1 // pred_region
      %52 = vsyncadd [#allocation7], 0
      %s53 = sshll.u32 %s5, 4
      %s54 = int_to_ptr.hbm [resolvable:$true] %s53
      %s55 = sshll.u32 [#allocation6], 4
      %s56 = int_to_ptr.vmem [resolvable:$true] %s55
      %61 = dma.hbm_to_vmem [thread:$0]  %s54, 256, %s56, [#allocation7], 64, 64, 4
    $region25: #{decoder_forward.1} parent=1 // pred_fallthru
      _
    // Predicated region
    $region26: #{decoder_forward.1} parent=1 // pred_check
      _
    $region27: #{decoder_forward.1} parent=1 // pred_check_branch
      %63 = sbr.rel (0) target = $region29
    $region28: #{decoder_forward.1} parent=1 // pred_region
      %65 = vsyncadd [#allocation7], 0
      %s67 = sshll.u32 %s6, 4
      %s68 = int_to_ptr.hbm [resolvable:$true] %s67
      %s69 = sshll.u32 [#allocation8], 4
      %s70 = int_to_ptr.vmem [resolvable:$true] %s69
      %72 = dma.hbm_to_vmem [thread:$0]  %s68, 16, %s70, [#allocation7]
    $region29: #{decoder_forward.1} parent=1 // pred_fallthru
      _
    // Predicated region
    $region30: #{decoder_forward.1} parent=1 // pred_check
      _
    $region31: #{decoder_forward.1} parent=1 // pred_check_branch
      %74 = sbr.rel (0) target = $region33
    $region32: #{decoder_forward.1} parent=1 // pred_region
      _
    $region33: #{decoder_forward.1} parent=1 // pred_fallthru
      _
    // Predicated region
    $region34: #{decoder_forward.1} parent=1 // pred_check
      _
    $region35: #{decoder_forward.1} parent=1 // pred_check_branch
      %76 = sbr.rel (0) target = $region37
    $region36: #{decoder_forward.1} parent=1 // pred_region
      _
    $region37: #{decoder_forward.1} parent=1 // pred_fallthru
      _
    // Predicated region
    $region38: #{decoder_forward.1} parent=1 // pred_check
      _
    $region39: #{decoder_forward.1} parent=1 // pred_check_branch
      %78 = sbr.rel (0) target = $region41
    $region40: #{decoder_forward.1} parent=1 // pred_region
      _
    $region41: #{decoder_forward.1} parent=1 // pred_fallthru
      _
    // Predicated region
    $region42: #{decoder_forward.1} parent=1 // pred_check
      _
    $region43: #{decoder_forward.1} parent=1 // pred_check_branch
      %80 = sbr.rel (0) target = $region45
    $region44: #{decoder_forward.1} parent=1 // pred_region
      _
    $region45: #{decoder_forward.1} parent=1 // pred_fallthru
      _
    // Predicated region
    $region46: #{decoder_forward.1} parent=1 // pred_check
      _
    $region47: #{decoder_forward.1} parent=1 // pred_check_branch
      %82 = sbr.rel (0) target = $region49
    $region48: #{decoder_forward.1} parent=1 // pred_region
      %84 = vsyncadd [#allocation10], 0
      %s85 = sshll.u32 %s11, 4
      %s86 = int_to_ptr.hbm [resolvable:$true] %s85
      %s87 = sshll.u32 [#allocation9], 4
      %s88 = int_to_ptr.vmem [resolvable:$true] %s87
      %93 = dma.hbm_to_vmem [thread:$0]  %s86, 48, %s88, [#allocation10], 16, 16, 1
    $region49: #{decoder_forward.1} parent=1 // pred_fallthru
      _
    // Predicated region
    $region50: #{decoder_forward.1} parent=1 // pred_check
      _
    $region51: #{decoder_forward.1} parent=1 // pred_check_branch
      %95 = sbr.rel (0) target = $region53
    $region52: #{decoder_forward.1} parent=1 // pred_region
      %97 = vsyncadd [#allocation10], 0
      %s98 = sshll.u32 %s12, 4
      %s99 = int_to_ptr.hbm [resolvable:$true] %s98
      %s100 = sshll.u32 [#allocation11], 4
      %s101 = int_to_ptr.vmem [resolvable:$true] %s100
      %106 = dma.hbm_to_vmem [thread:$0]  %s99, 48, %s101, [#allocation10], 16, 16, 1
    $region53: #{decoder_forward.1} parent=1 // pred_fallthru
      _
    // Predicated region
    $region54: #{decoder_forward.1} parent=1 // pred_check
      _
    $region55: #{decoder_forward.1} parent=1 // pred_check_branch
      %108 = sbr.rel (0) target = $region57
    $region56: #{decoder_forward.1} parent=1 // pred_region
      _
    $region57: #{decoder_forward.1} parent=1 // pred_fallthru
      _
    // Predicated region
    $region58: #{decoder_forward.1} parent=1 // pred_check
      _
    $region59: #{decoder_forward.1} parent=1 // pred_check_branch
      %110 = sbr.rel (0) target = $region61
    $region60: #{decoder_forward.1} parent=1 // pred_region
      _
    $region61: #{decoder_forward.1} parent=1 // pred_fallthru
      _
    // Predicated region
    $region62: #{decoder_forward.1} parent=1 // pred_check
      _
    $region63: #{decoder_forward.1} parent=1 // pred_check_branch
      %112 = sbr.rel (0) target = $region65
    $region64: #{decoder_forward.1} parent=1 // pred_region
      _
    $region65: #{decoder_forward.1} parent=1 // pred_fallthru
      _
    // Predicated region
    $region66: #{decoder_forward.1} parent=1 // pred_check
      _
    $region67: #{decoder_forward.1} parent=1 // pred_check_branch
      %114 = sbr.rel (0) target = $region69
    $region68: #{decoder_forward.1} parent=1 // pred_region
      %116 = vsyncadd [#allocation13], 0
      %s118 = sshll.u32 %s16, 4
      %s119 = int_to_ptr.hbm [resolvable:$true] %s118
      %s120 = sshll.u32 [#allocation12], 4
      %s121 = int_to_ptr.vmem [resolvable:$true] %s120
      %123 = dma.hbm_to_vmem [thread:$0]  %s119, 32, %s121, [#allocation13]
    $region69: #{decoder_forward.1} parent=1 // pred_fallthru
      _
    // Predicated region
    $region70: #{decoder_forward.1} parent=1 // pred_check
      _
    $region71: #{decoder_forward.1} parent=1 // pred_check_branch
      %125 = sbr.rel (0) target = $region73
    $region72: #{decoder_forward.1} parent=1 // pred_region
      %127 = dma.done [#allocation5], 256
    $region73: #{decoder_forward.1} parent=1 // pred_fallthru
      _
    // Predicated region
    $region74: #{decoder_forward.1} parent=1 // pred_check
      _
    $region75: #{decoder_forward.1} parent=1 // pred_check_branch
      %129 = sbr.rel (0) target = $region77
    $region76: #{decoder_forward.1} parent=1 // pred_region
      %131 = dma.done [#allocation7], 256
    $region77: #{decoder_forward.1} parent=1 // pred_fallthru
      _
    // Predicated region
    $region78: #{decoder_forward.1} parent=1 // pred_check
      _
    $region79: #{decoder_forward.1} parent=1 // pred_check_branch
      %133 = sbr.rel (0) target = $region81
    $region80: #{decoder_forward.1} parent=1 // pred_region
      %135 = dma.done [#allocation7], 16
    $region81: #{decoder_forward.1} parent=1 // pred_fallthru
      _
    // Predicated region
    $region82: #{decoder_forward.1} parent=1 // pred_check
      _
    $region83: #{decoder_forward.1} parent=1 // pred_check_branch
      %137 = sbr.rel (0) target = $region85
    $region84: #{decoder_forward.1} parent=1 // pred_region
      %139 = dma.done [#allocation10], 48
    $region85: #{decoder_forward.1} parent=1 // pred_fallthru
      _
    // Predicated region
    $region86: #{decoder_forward.1} parent=1 // pred_check
      _
    $region87: #{decoder_forward.1} parent=1 // pred_check_branch
      %141 = sbr.rel (0) target = $region89
    $region88: #{decoder_forward.1} parent=1 // pred_region
      %143 = dma.done [#allocation10], 48
    $region89: #{decoder_forward.1} parent=1 // pred_fallthru
      _
    // Predicated region
    $region90: #{decoder_forward.1} parent=1 // pred_check
      _
    $region91: #{decoder_forward.1} parent=1 // pred_check_branch
      %145 = sbr.rel (0) target = $region93
    $region92: #{decoder_forward.1} parent=1 // pred_region
      %147 = dma.done [#allocation13], 32
    $region93: #{decoder_forward.1} parent=1 // pred_fallthru
      _
    %p149 = scmp.eq.s32.totalorder 0, 0
    // Predicated region
    $region94: #{decoder_forward.1} parent=1 // pred_check
      %p150 = pneg %p149
    $region95: #{decoder_forward.1} parent=1 // pred_check_branch
      %152 = sbr.rel (%p150) target = $region97
    $region96: #{decoder_forward.1} parent=1 // pred_region
      %v153 = vld [vmem:[%s0] sm:$0xf]
      %v154 = vld [vmem:[%s0 + $0x4] sm:$0xf]
      %v155 = vld [vmem:[%s1] sm:$0xff]
      %v156 = vld [vmem:[%s1 + $0x8] sm:$0xff]
      %v157 = vld [vmem:[%s2] sm:$0xf]
      %v158 = vld [vmem:[%s2 + $0x4] sm:$0xf]
      %v159 = vld [vmem:[%s2 + $0x8] sm:$0xf]
      %v160 = vld [vmem:[%s2 + $0xc] sm:$0xf]
      %v161 = vld [vmem:[%s2 + $0x10] sm:$0xf]
      %v162 = vld [vmem:[%s2 + $0x14] sm:$0xf]
      %v163 = vld [vmem:[%s2 + $0x18] sm:$0xf]
      %v164 = vld [vmem:[%s2 + $0x1c] sm:$0xf]
      %v165 = vld [vmem:[%s2 + $0x20] sm:$0xf]
      %v166 = vld [vmem:[%s2 + $0x24] sm:$0xf]
      %v167 = vld [vmem:[%s2 + $0x28] sm:$0xf]
      %v168 = vld [vmem:[%s2 + $0x2c] sm:$0xf]
      %v169 = vld [vmem:[%s2 + $0x30] sm:$0xf]
      %v170 = vld [vmem:[%s2 + $0x34] sm:$0xf]
      %v171 = vld [vmem:[%s2 + $0x38] sm:$0xf]
      %v172 = vld [vmem:[%s2 + $0x3c] sm:$0xf]
      %v173 = vld [vmem:[%s3] sm:$0xff]
      %v174 = vld [vmem:[%s3 + $0x8] sm:$0xff]
      %v175 = vpack.c.bf16 %v156, %v155
      %v176 = vld [vmem:[#allocation4] sm:$0xf]
      %v177 = vld [vmem:[#allocation4 + $0x4] sm:$0xf]
      %v178 = vld [vmem:[#allocation4 + $0x8] sm:$0xf]
      %v179 = vld [vmem:[#allocation4 + $0xc] sm:$0xf]
      %v180 = vld [vmem:[#allocation8] sm:$0x1]
      %v182 = vperm.slane %v180, 0
      %v188 = vunpack.c.l.b16 %v176
      %v189 = vunpack.c.l.b16 %v177
      %v190 = vunpack.c.l.b16 %v178
      %v191 = vunpack.c.l.b16 %v179
      %v192 = vpack.c.b16 %v189, %v188
      %v193 = vpack.c.b16 %v191, %v190
      %vm196 = vcmask 261120
      %v198 = vsel %vm196, %v175, 0
      %200 = vmatpush.bf16.msra.mxu0 0
      %201 = vmatpush.bf16.msra.mxu0 0
      %202 = vmatpush.bf16.msra.mxu0 0
      %203 = vmatpush.bf16.msra.mxu0 0
      %204 = vmatpush.bf16.msra.mxu0 0
      %205 = vmatpush.bf16.msra.mxu0 0
      %206 = vmatpush.bf16.msra.mxu0 %v193
      %207 = vmatpush.bf16.msra.mxu0 %v192
      %208 = vmatmul.bf16.gmra.mxu0 %v198
      %v209 = vpop.f32.mrf.mxu0
      %v210 = vadd.f32 %v182, %v209
      %v211 = vpop.f32.mrf.mxu0
      %v212 = vadd.f32 %v182, %v211
      %213 = vdwg.mxu0
      %v214 = vld [vmem:[#allocation6] sm:$0xf]
      %v215 = vld [vmem:[#allocation6 + $0x4] sm:$0xf]
      %v216 = vld [vmem:[#allocation6 + $0x8] sm:$0xf]
      %v217 = vld [vmem:[#allocation6 + $0xc] sm:$0xf]
      %v234 = vunpack.c.l.b16 %v157
      %v235 = vunpack.c.l.b16 %v158
      %v236 = vunpack.c.l.b16 %v159
      %v237 = vunpack.c.l.b16 %v160
      %v238 = vunpack.c.l.b16 %v161
      %v239 = vunpack.c.l.b16 %v162
      %v240 = vunpack.c.l.b16 %v163
      %v241 = vunpack.c.l.b16 %v164
      %v242 = vunpack.c.l.b16 %v165
      %v243 = vunpack.c.l.b16 %v166
      %v244 = vunpack.c.l.b16 %v167
      %v245 = vunpack.c.l.b16 %v168
      %v246 = vunpack.c.l.b16 %v169
      %v247 = vunpack.c.l.b16 %v170
      %v248 = vunpack.c.l.b16 %v171
      %v249 = vunpack.c.l.b16 %v172
      %v250 = vpack.c.b16 %v235, %v234
      %v251 = vpack.c.b16 %v237, %v236
      %v252 = vpack.c.b16 %v239, %v238
      %v253 = vpack.c.b16 %v241, %v240
      %v254 = vpack.c.b16 %v243, %v242
      %v255 = vpack.c.b16 %v245, %v244
      %v256 = vpack.c.b16 %v247, %v246
      %v257 = vpack.c.b16 %v249, %v248
      %v262 = vunpack.c.l.b16 %v214
      %v263 = vunpack.c.l.b16 %v215
      %v264 = vunpack.c.l.b16 %v216
      %v265 = vunpack.c.l.b16 %v217
      %v266 = vpack.c.b16 %v263, %v262
      %v267 = vpack.c.b16 %v265, %v264
      %v271 = vsel %vm196, %v250, 0
      %v274 = vsel %vm196, %v251, 0
      %v277 = vsel %vm196, %v252, 0
      %v280 = vsel %vm196, %v253, 0
      %v283 = vsel %vm196, %v254, 0
      %v286 = vsel %vm196, %v255, 0
      %v289 = vsel %vm196, %v256, 0
      %v292 = vsel %vm196, %v257, 0
      %294 = vmatpush.bf16.msra.mxu0 0
      %295 = vmatpush.bf16.msra.mxu0 0
      %296 = vmatpush.bf16.msra.mxu0 0
      %297 = vmatpush.bf16.msra.mxu0 0
      %298 = vmatpush.bf16.msra.mxu0 0
      %299 = vmatpush.bf16.msra.mxu0 0
      %300 = vmatpush.bf16.msra.mxu0 %v267
      %301 = vmatpush.bf16.msra.mxu0 %v266
      %302 = vmatmul.bf16.gmra.mxu0 %v271
      %v303 = vpop.f32.mrf.mxu0
      %v304 = vadd.f32 0.0, %v303
      %v305 = vpop.f32.mrf.mxu0
      %v306 = vadd.f32 0.0, %v305
      %307 = vmatmul.bf16.gmra.mxu0 %v274
      %v308 = vpop.f32.mrf.mxu0
      %v309 = vadd.f32 0.0, %v308
      %v310 = vpop.f32.mrf.mxu0
      %v311 = vadd.f32 0.0, %v310
      %312 = vmatmul.bf16.gmra.mxu0 %v277
      %v313 = vpop.f32.mrf.mxu0
      %v314 = vadd.f32 0.0, %v313
      %v315 = vpop.f32.mrf.mxu0
      %v316 = vadd.f32 0.0, %v315
      %317 = vmatmul.bf16.gmra.mxu0 %v280
      %v318 = vpop.f32.mrf.mxu0
      %v319 = vadd.f32 0.0, %v318
      %v320 = vpop.f32.mrf.mxu0
      %v321 = vadd.f32 0.0, %v320
      %322 = vmatmul.bf16.gmra.mxu0 %v283
      %v323 = vpop.f32.mrf.mxu0
      %v324 = vadd.f32 0.0, %v323
      %v325 = vpop.f32.mrf.mxu0
      %v326 = vadd.f32 0.0, %v325
      %327 = vmatmul.bf16.gmra.mxu0 %v286
      %v328 = vpop.f32.mrf.mxu0
      %v329 = vadd.f32 0.0, %v328
      %v330 = vpop.f32.mrf.mxu0
      %v331 = vadd.f32 0.0, %v330
      %332 = vmatmul.bf16.gmra.mxu0 %v289
      %v333 = vpop.f32.mrf.mxu0
      %v334 = vadd.f32 0.0, %v333
      %v335 = vpop.f32.mrf.mxu0
      %v336 = vadd.f32 0.0, %v335
      %337 = vmatmul.bf16.gmra.mxu0 %v292
      %v338 = vpop.f32.mrf.mxu0
      %v339 = vadd.f32 0.0, %v338
      %v340 = vpop.f32.mrf.mxu0
      %v341 = vadd.f32 0.0, %v340
      %342 = vdwg.mxu0
      %v345 = vrot.slane %v210, 1
      %v346 = vrot.slane %v210, 2
      %v347 = vrot.slane %v210, 3
      %v348 = vrot.slane %v210, 4
      %v349 = vrot.slane %v210, 5
      %v350 = vrot.slane %v210, 6
      %v351 = vrot.slane %v210, 7
      %v352 = vrot.slane %v212, 1
      %v353 = vrot.slane %v212, 2
      %v354 = vrot.slane %v212, 3
      %v355 = vrot.slane %v212, 4
      %v356 = vrot.slane %v212, 5
      %v357 = vrot.slane %v212, 6
      %v358 = vrot.slane %v212, 7
      %v359 = vperm.slane %v210, 0
      %v360 = vperm.slane %v345, 0
      %v361 = vperm.slane %v346, 0
      %v362 = vperm.slane %v347, 0
      %v363 = vperm.slane %v348, 0
      %v364 = vperm.slane %v349, 0
      %v365 = vperm.slane %v350, 0
      %v366 = vperm.slane %v351, 0
      %v367 = vperm.slane %v212, 0
      %v368 = vperm.slane %v352, 0
      %v369 = vperm.slane %v353, 0
      %v370 = vperm.slane %v354, 0
      %v371 = vperm.slane %v355, 0
      %v372 = vperm.slane %v356, 0
      %v373 = vperm.slane %v357, 0
      %v374 = vperm.slane %v358, 0
      %v391 = vadd.f32 %v304, %v359
      %v392 = vadd.f32 %v306, %v360
      %v393 = vadd.f32 %v309, %v361
      %v394 = vadd.f32 %v311, %v362
      %v395 = vadd.f32 %v314, %v363
      %v396 = vadd.f32 %v316, %v364
      %v397 = vadd.f32 %v319, %v365
      %v398 = vadd.f32 %v321, %v366
      %v399 = vadd.f32 %v324, %v367
      %v400 = vadd.f32 %v326, %v368
      %v401 = vadd.f32 %v329, %v369
      %v402 = vadd.f32 %v331, %v370
      %v403 = vadd.f32 %v334, %v371
      %v404 = vadd.f32 %v336, %v372
      %v405 = vadd.f32 %v339, %v373
      %v406 = vadd.f32 %v341, %v374
      %v407 = vtanh.pop %v391
      %v408 = vtanh.pop %v392
      %v409 = vtanh.pop %v393
      %v410 = vtanh.pop %v394
      %v411 = vtanh.pop %v395
      %v412 = vtanh.pop %v396
      %v413 = vtanh.pop %v397
      %v414 = vtanh.pop %v398
      %v415 = vtanh.pop %v399
      %v416 = vtanh.pop %v400
      %v417 = vtanh.pop %v401
      %v418 = vtanh.pop %v402
      %v419 = vtanh.pop %v403
      %v420 = vtanh.pop %v404
      %v421 = vtanh.pop %v405
      %v422 = vtanh.pop %v406
      %v423 = vld [vmem:[%s7] sm:$0x1]
      %v425 = vperm.slane %v423, 0
      %v427 = vmul.f32 %v407, %v425
      %v428 = vmul.f32 %v408, %v425
      %v429 = vmul.f32 %v409, %v425
      %v430 = vmul.f32 %v410, %v425
      %v431 = vmul.f32 %v411, %v425
      %v432 = vmul.f32 %v412, %v425
      %v433 = vmul.f32 %v413, %v425
      %v434 = vmul.f32 %v414, %v425
      %v435 = vmul.f32 %v415, %v425
      %v436 = vmul.f32 %v416, %v425
      %v437 = vmul.f32 %v417, %v425
      %v438 = vmul.f32 %v418, %v425
      %v439 = vmul.f32 %v419, %v425
      %v440 = vmul.f32 %v420, %v425
      %v441 = vmul.f32 %v421, %v425
      %v442 = vmul.f32 %v422, %v425
      %v443 = vsel %vm196, %v427, 0.0
      %444 = vadd.xlane.f32.xlu0 %v443
      %v445 = vpop.xlane.xlu0 %444
      %v446 = vsel %vm196, %v428, 0.0
      %447 = vadd.xlane.f32.xlu0 %v446
      %v448 = vpop.xlane.xlu0 %447
      %v449 = vsel %vm196, %v429, 0.0
      %450 = vadd.xlane.f32.xlu0 %v449
      %v451 = vpop.xlane.xlu0 %450
      %v452 = vsel %vm196, %v430, 0.0
      %453 = vadd.xlane.f32.xlu0 %v452
      %v454 = vpop.xlane.xlu0 %453
      %v455 = vsel %vm196, %v431, 0.0
      %456 = vadd.xlane.f32.xlu0 %v455
      %v457 = vpop.xlane.xlu0 %456
      %v458 = vsel %vm196, %v432, 0.0
      %459 = vadd.xlane.f32.xlu0 %v458
      %v460 = vpop.xlane.xlu0 %459
      %v461 = vsel %vm196, %v433, 0.0
      %462 = vadd.xlane.f32.xlu0 %v461
      %v463 = vpop.xlane.xlu0 %462
      %v464 = vsel %vm196, %v434, 0.0
      %465 = vadd.xlane.f32.xlu0 %v464
      %v466 = vpop.xlane.xlu0 %465
      %v467 = vsel %vm196, %v435, 0.0
      %468 = vadd.xlane.f32.xlu0 %v467
      %v469 = vpop.xlane.xlu0 %468
      %v470 = vsel %vm196, %v436, 0.0
      %471 = vadd.xlane.f32.xlu0 %v470
      %v472 = vpop.xlane.xlu0 %471
      %v473 = vsel %vm196, %v437, 0.0
      %474 = vadd.xlane.f32.xlu0 %v473
      %v475 = vpop.xlane.xlu0 %474
      %v476 = vsel %vm196, %v438, 0.0
      %477 = vadd.xlane.f32.xlu0 %v476
      %v478 = vpop.xlane.xlu0 %477
      %v479 = vsel %vm196, %v439, 0.0
      %480 = vadd.xlane.f32.xlu0 %v479
      %v481 = vpop.xlane.xlu0 %480
      %v482 = vsel %vm196, %v440, 0.0
      %483 = vadd.xlane.f32.xlu0 %v482
      %v484 = vpop.xlane.xlu0 %483
      %v485 = vsel %vm196, %v441, 0.0
      %486 = vadd.xlane.f32.xlu0 %v485
      %v487 = vpop.xlane.xlu0 %486
      %v488 = vsel %vm196, %v442, 0.0
      %489 = vadd.xlane.f32.xlu0 %v488
      %v490 = vpop.xlane.xlu0 %489
      %vm491 = vcmp.eq.f32.partialorder %v173, 0.0
      %vm492 = vcmp.eq.f32.partialorder %v174, 0.0
      %v509 = vlaneseq
      %v510 = vand.u32 %v509, 127
      %v511 = vperm.slane %v445, %v510
      %v512 = vperm.slane %v448, %v510
      %v513 = vperm.slane %v451, %v510
      %v514 = vperm.slane %v454, %v510
      %v515 = vperm.slane %v457, %v510
      %v516 = vperm.slane %v460, %v510
      %v517 = vperm.slane %v463, %v510
      %v518 = vperm.slane %v466, %v510
      %v519 = vperm.slane %v469, %v510
      %v520 = vperm.slane %v472, %v510
      %v521 = vperm.slane %v475, %v510
      %v522 = vperm.slane %v478, %v510
      %v523 = vperm.slane %v481, %v510
      %v524 = vperm.slane %v484, %v510
      %v525 = vperm.slane %v487, %v510
      %v526 = vperm.slane %v490, %v510
      %vm527 = vcmask 1041409
      %v528 = vsel %vm527, %v512, %v511
      %vm529 = vcmask 1042434
      %v530 = vsel %vm529, %v513, %v528
      %vm531 = vcmask 1043459
      %v532 = vsel %vm531, %v514, %v530
      %vm533 = vcmask 1044484
      %v534 = vsel %vm533, %v515, %v532
      %vm535 = vcmask 1045509
      %v536 = vsel %vm535, %v516, %v534
      %vm537 = vcmask 1046534
      %v538 = vsel %vm537, %v517, %v536
      %vm539 = vcmask 1047559
      %v540 = vsel %vm539, %v518, %v538
      %v541 = vsel %vm527, %v520, %v519
      %v542 = vsel %vm529, %v521, %v541
      %v543 = vsel %vm531, %v522, %v542
      %v544 = vsel %vm533, %v523, %v543
      %v545 = vsel %vm535, %v524, %v544
      %v546 = vsel %vm537, %v525, %v545
      %v547 = vsel %vm539, %v526, %v546
      %v550 = vsel %vm491, -1e+10, %v540
      %v551 = vsel %vm492, -1e+10, %v547
      %vm552 = vcmask 64512
      %v553 = vsel %vm552, %v550, -inf
      %554 = vmax.xlane.f32.xlu0 %v553
      %v555 = vpop.xlane.xlu0 %554
      %v556 = vsel %vm552, %v551, -inf
      %557 = vmax.xlane.f32.xlu0 %v556
      %v558 = vpop.xlane.xlu0 %557
      %v559 = vsub.f32 %v550, %v555
      %v560 = vsub.f32 %v551, %v558
      %v561 = vmul.f32 %v559, 1.442695
      %v562 = vpow.pop %v561
      %v563 = vmul.f32 %v560, 1.442695
      %v564 = vpow.pop %v563
      %v565 = vsel %vm552, %v562, 0.0
      %566 = vadd.xlane.f32.xlu0 %v565
      %v567 = vpop.xlane.xlu0 %566
      %v568 = vsel %vm552, %v564, 0.0
      %569 = vadd.xlane.f32.xlu0 %v568
      %v570 = vpop.xlane.xlu0 %569
      %v571 = vrcp.pop %v567
      %v572 = vrcp.pop %v570
      %v573 = vmul.f32 %v562, %v571
      %v574 = vmul.f32 %v564, %v572
      %v577 = vrot.slane %v573, 1
      %v578 = vrot.slane %v573, 2
      %v579 = vrot.slane %v573, 3
      %v580 = vrot.slane %v573, 4
      %v581 = vrot.slane %v573, 5
      %v582 = vrot.slane %v573, 6
      %v583 = vrot.slane %v573, 7
      %v584 = vrot.slane %v574, 1
      %v585 = vrot.slane %v574, 2
      %v586 = vrot.slane %v574, 3
      %v587 = vrot.slane %v574, 4
      %v588 = vrot.slane %v574, 5
      %v589 = vrot.slane %v574, 6
      %v590 = vrot.slane %v574, 7
      %v605 = vpack.c.bf16 %v573, %v573
      %v606 = vpack.c.bf16 %v577, %v577
      %v607 = vpack.c.bf16 %v578, %v578
      %v608 = vpack.c.bf16 %v579, %v579
      %v609 = vpack.c.bf16 %v580, %v580
      %v610 = vpack.c.bf16 %v581, %v581
      %v611 = vpack.c.bf16 %v582, %v582
      %v612 = vpack.c.bf16 %v583, %v583
      %v613 = vpack.c.bf16 %v574, %v574
      %v614 = vpack.c.bf16 %v584, %v584
      %v615 = vpack.c.bf16 %v585, %v585
      %v616 = vpack.c.bf16 %v586, %v586
      %v617 = vpack.c.bf16 %v587, %v587
      %v618 = vpack.c.bf16 %v588, %v588
      %v619 = vpack.c.bf16 %v589, %v589
      %v620 = vpack.c.bf16 %v590, %v590
      %v622 = vsel %vm552, %v605, 0
      %vm624 = vcmask 1043456
      %v626 = vsel %vm624, %v157, 0
      %628 = vmatpush.bf16.msra.mxu0 0
      %629 = vmatpush.bf16.msra.mxu0 0
      %630 = vmatpush.bf16.msra.mxu0 0
      %631 = vmatpush.bf16.msra.mxu0 0
      %632 = vmatpush.bf16.msra.mxu0 0
      %633 = vmatpush.bf16.msra.mxu0 0
      %634 = vmatpush.bf16.msra.mxu0 0
      %635 = vmatpush.bf16.msra.mxu0 %v626
      %636 = vmatmul.bf16.gmra.mxu0 %v622
      %v637 = vpop.f32.mrf.mxu0
      %v638 = vadd.f32 0.0, %v637
      %v639 = vpop.f32.mrf.mxu0
      %640 = vdwg.mxu0
      %v642 = vsel %vm552, %v606, 0
      %v645 = vsel %vm624, %v158, 0
      %647 = vmatpush.bf16.msra.mxu0 0
      %648 = vmatpush.bf16.msra.mxu0 0
      %649 = vmatpush.bf16.msra.mxu0 0
      %650 = vmatpush.bf16.msra.mxu0 0
      %651 = vmatpush.bf16.msra.mxu0 0
      %652 = vmatpush.bf16.msra.mxu0 0
      %653 = vmatpush.bf16.msra.mxu0 0
      %654 = vmatpush.bf16.msra.mxu0 %v645
      %655 = vmatmul.bf16.gmra.mxu0 %v642
      %v656 = vpop.f32.mrf.mxu0
      %v657 = vadd.f32 0.0, %v656
      %v658 = vpop.f32.mrf.mxu0
      %659 = vdwg.mxu0
      %v661 = vsel %vm552, %v607, 0
      %v664 = vsel %vm624, %v159, 0
      %666 = vmatpush.bf16.msra.mxu0 0
      %667 = vmatpush.bf16.msra.mxu0 0
      %668 = vmatpush.bf16.msra.mxu0 0
      %669 = vmatpush.bf16.msra.mxu0 0
      %670 = vmatpush.bf16.msra.mxu0 0
      %671 = vmatpush.bf16.msra.mxu0 0
      %672 = vmatpush.bf16.msra.mxu0 0
      %673 = vmatpush.bf16.msra.mxu0 %v664
      %674 = vmatmul.bf16.gmra.mxu0 %v661
      %v675 = vpop.f32.mrf.mxu0
      %v676 = vadd.f32 0.0, %v675
      %v677 = vpop.f32.mrf.mxu0
      %678 = vdwg.mxu0
      %v680 = vsel %vm552, %v608, 0
      %v683 = vsel %vm624, %v160, 0
      %685 = vmatpush.bf16.msra.mxu0 0
      %686 = vmatpush.bf16.msra.mxu0 0
      %687 = vmatpush.bf16.msra.mxu0 0
      %688 = vmatpush.bf16.msra.mxu0 0
      %689 = vmatpush.bf16.msra.mxu0 0
      %690 = vmatpush.bf16.msra.mxu0 0
      %691 = vmatpush.bf16.msra.mxu0 0
      %692 = vmatpush.bf16.msra.mxu0 %v683
      %693 = vmatmul.bf16.gmra.mxu0 %v680
      %v694 = vpop.f32.mrf.mxu0
      %v695 = vadd.f32 0.0, %v694
      %v696 = vpop.f32.mrf.mxu0
      %697 = vdwg.mxu0
      %v699 = vsel %vm552, %v609, 0
      %v702 = vsel %vm624, %v161, 0
      %704 = vmatpush.bf16.msra.mxu0 0
      %705 = vmatpush.bf16.msra.mxu0 0
      %706 = vmatpush.bf16.msra.mxu0 0
      %707 = vmatpush.bf16.msra.mxu0 0
      %708 = vmatpush.bf16.msra.mxu0 0
      %709 = vmatpush.bf16.msra.mxu0 0
      %710 = vmatpush.bf16.msra.mxu0 0
      %711 = vmatpush.bf16.msra.mxu0 %v702
      %712 = vmatmul.bf16.gmra.mxu0 %v699
      %v713 = vpop.f32.mrf.mxu0
      %v714 = vadd.f32 0.0, %v713
      %v715 = vpop.f32.mrf.mxu0
      %716 = vdwg.mxu0
      %v718 = vsel %vm552, %v610, 0
      %v721 = vsel %vm624, %v162, 0
      %723 = vmatpush.bf16.msra.mxu0 0
      %724 = vmatpush.bf16.msra.mxu0 0
      %725 = vmatpush.bf16.msra.mxu0 0
      %726 = vmatpush.bf16.msra.mxu0 0
      %727 = vmatpush.bf16.msra.mxu0 0
      %728 = vmatpush.bf16.msra.mxu0 0
      %729 = vmatpush.bf16.msra.mxu0 0
      %730 = vmatpush.bf16.msra.mxu0 %v721
      %731 = vmatmul.bf16.gmra.mxu0 %v718
      %v732 = vpop.f32.mrf.mxu0
      %v733 = vadd.f32 0.0, %v732
      %v734 = vpop.f32.mrf.mxu0
      %735 = vdwg.mxu0
      %v737 = vsel %vm552, %v611, 0
      %v740 = vsel %vm624, %v163, 0
      %742 = vmatpush.bf16.msra.mxu0 0
      %743 = vmatpush.bf16.msra.mxu0 0
      %744 = vmatpush.bf16.msra.mxu0 0
      %745 = vmatpush.bf16.msra.mxu0 0
      %746 = vmatpush.bf16.msra.mxu0 0
      %747 = vmatpush.bf16.msra.mxu0 0
      %748 = vmatpush.bf16.msra.mxu0 0
      %749 = vmatpush.bf16.msra.mxu0 %v740
      %750 = vmatmul.bf16.gmra.mxu0 %v737
      %v751 = vpop.f32.mrf.mxu0
      %v752 = vadd.f32 0.0, %v751
      %v753 = vpop.f32.mrf.mxu0
      %754 = vdwg.mxu0
      %v756 = vsel %vm552, %v612, 0
      %v759 = vsel %vm624, %v164, 0
      %761 = vmatpush.bf16.msra.mxu0 0
      %762 = vmatpush.bf16.msra.mxu0 0
      %763 = vmatpush.bf16.msra.mxu0 0
      %764 = vmatpush.bf16.msra.mxu0 0
      %765 = vmatpush.bf16.msra.mxu0 0
      %766 = vmatpush.bf16.msra.mxu0 0
      %767 = vmatpush.bf16.msra.mxu0 0
      %768 = vmatpush.bf16.msra.mxu0 %v759
      %769 = vmatmul.bf16.gmra.mxu0 %v756
      %v770 = vpop.f32.mrf.mxu0
      %v771 = vadd.f32 0.0, %v770
      %v772 = vpop.f32.mrf.mxu0
      %773 = vdwg.mxu0
      %v775 = vsel %vm552, %v613, 0
      %v778 = vsel %vm624, %v165, 0
      %780 = vmatpush.bf16.msra.mxu0 0
      %781 = vmatpush.bf16.msra.mxu0 0
      %782 = vmatpush.bf16.msra.mxu0 0
      %783 = vmatpush.bf16.msra.mxu0 0
      %784 = vmatpush.bf16.msra.mxu0 0
      %785 = vmatpush.bf16.msra.mxu0 0
      %786 = vmatpush.bf16.msra.mxu0 0
      %787 = vmatpush.bf16.msra.mxu0 %v778
      %788 = vmatmul.bf16.gmra.mxu0 %v775
      %v789 = vpop.f32.mrf.mxu0
      %v790 = vadd.f32 0.0, %v789
      %v791 = vpop.f32.mrf.mxu0
      %792 = vdwg.mxu0
      %v794 = vsel %vm552, %v614, 0
      %v797 = vsel %vm624, %v166, 0
      %799 = vmatpush.bf16.msra.mxu0 0
      %800 = vmatpush.bf16.msra.mxu0 0
      %801 = vmatpush.bf16.msra.mxu0 0
      %802 = vmatpush.bf16.msra.mxu0 0
      %803 = vmatpush.bf16.msra.mxu0 0
      %804 = vmatpush.bf16.msra.mxu0 0
      %805 = vmatpush.bf16.msra.mxu0 0
      %806 = vmatpush.bf16.msra.mxu0 %v797
      %807 = vmatmul.bf16.gmra.mxu0 %v794
      %v808 = vpop.f32.mrf.mxu0
      %v809 = vadd.f32 0.0, %v808
      %v810 = vpop.f32.mrf.mxu0
      %811 = vdwg.mxu0
      %v813 = vsel %vm552, %v615, 0
      %v816 = vsel %vm624, %v167, 0
      %818 = vmatpush.bf16.msra.mxu0 0
      %819 = vmatpush.bf16.msra.mxu0 0
      %820 = vmatpush.bf16.msra.mxu0 0
      %821 = vmatpush.bf16.msra.mxu0 0
      %822 = vmatpush.bf16.msra.mxu0 0
      %823 = vmatpush.bf16.msra.mxu0 0
      %824 = vmatpush.bf16.msra.mxu0 0
      %825 = vmatpush.bf16.msra.mxu0 %v816
      %826 = vmatmul.bf16.gmra.mxu0 %v813
      %v827 = vpop.f32.mrf.mxu0
      %v828 = vadd.f32 0.0, %v827
      %v829 = vpop.f32.mrf.mxu0
      %830 = vdwg.mxu0
      %v832 = vsel %vm552, %v616, 0
      %v835 = vsel %vm624, %v168, 0
      %837 = vmatpush.bf16.msra.mxu0 0
      %838 = vmatpush.bf16.msra.mxu0 0
      %839 = vmatpush.bf16.msra.mxu0 0
      %840 = vmatpush.bf16.msra.mxu0 0
      %841 = vmatpush.bf16.msra.mxu0 0
      %842 = vmatpush.bf16.msra.mxu0 0
      %843 = vmatpush.bf16.msra.mxu0 0
      %844 = vmatpush.bf16.msra.mxu0 %v835
      %845 = vmatmul.bf16.gmra.mxu0 %v832
      %v846 = vpop.f32.mrf.mxu0
      %v847 = vadd.f32 0.0, %v846
      %v848 = vpop.f32.mrf.mxu0
      %849 = vdwg.mxu0
      %v851 = vsel %vm552, %v617, 0
      %v854 = vsel %vm624, %v169, 0
      %856 = vmatpush.bf16.msra.mxu0 0
      %857 = vmatpush.bf16.msra.mxu0 0
      %858 = vmatpush.bf16.msra.mxu0 0
      %859 = vmatpush.bf16.msra.mxu0 0
      %860 = vmatpush.bf16.msra.mxu0 0
      %861 = vmatpush.bf16.msra.mxu0 0
      %862 = vmatpush.bf16.msra.mxu0 0
      %863 = vmatpush.bf16.msra.mxu0 %v854
      %864 = vmatmul.bf16.gmra.mxu0 %v851
      %v865 = vpop.f32.mrf.mxu0
      %v866 = vadd.f32 0.0, %v865
      %v867 = vpop.f32.mrf.mxu0
      %868 = vdwg.mxu0
      %v870 = vsel %vm552, %v618, 0
      %v873 = vsel %vm624, %v170, 0
      %875 = vmatpush.bf16.msra.mxu0 0
      %876 = vmatpush.bf16.msra.mxu0 0
      %877 = vmatpush.bf16.msra.mxu0 0
      %878 = vmatpush.bf16.msra.mxu0 0
      %879 = vmatpush.bf16.msra.mxu0 0
      %880 = vmatpush.bf16.msra.mxu0 0
      %881 = vmatpush.bf16.msra.mxu0 0
      %882 = vmatpush.bf16.msra.mxu0 %v873
      %883 = vmatmul.bf16.gmra.mxu0 %v870
      %v884 = vpop.f32.mrf.mxu0
      %v885 = vadd.f32 0.0, %v884
      %v886 = vpop.f32.mrf.mxu0
      %887 = vdwg.mxu0
      %v889 = vsel %vm552, %v619, 0
      %v892 = vsel %vm624, %v171, 0
      %894 = vmatpush.bf16.msra.mxu0 0
      %895 = vmatpush.bf16.msra.mxu0 0
      %896 = vmatpush.bf16.msra.mxu0 0
      %897 = vmatpush.bf16.msra.mxu0 0
      %898 = vmatpush.bf16.msra.mxu0 0
      %899 = vmatpush.bf16.msra.mxu0 0
      %900 = vmatpush.bf16.msra.mxu0 0
      %901 = vmatpush.bf16.msra.mxu0 %v892
      %902 = vmatmul.bf16.gmra.mxu0 %v889
      %v903 = vpop.f32.mrf.mxu0
      %v904 = vadd.f32 0.0, %v903
      %v905 = vpop.f32.mrf.mxu0
      %906 = vdwg.mxu0
      %v908 = vsel %vm552, %v620, 0
      %v911 = vsel %vm624, %v172, 0
      %913 = vmatpush.bf16.msra.mxu0 0
      %914 = vmatpush.bf16.msra.mxu0 0
      %915 = vmatpush.bf16.msra.mxu0 0
      %916 = vmatpush.bf16.msra.mxu0 0
      %917 = vmatpush.bf16.msra.mxu0 0
      %918 = vmatpush.bf16.msra.mxu0 0
      %919 = vmatpush.bf16.msra.mxu0 0
      %920 = vmatpush.bf16.msra.mxu0 %v911
      %921 = vmatmul.bf16.gmra.mxu0 %v908
      %v922 = vpop.f32.mrf.mxu0
      %v923 = vadd.f32 0.0, %v922
      %v924 = vpop.f32.mrf.mxu0
      %925 = vdwg.mxu0
      %vm926 = vcmask 253952
      %927 = vst.msk [vmem:[#allocation3] sm:$0x1] %vm926, %v638
      %928 = vst.msk [vmem:[#allocation3 + $0x1] sm:$0x1] %vm926, %v657
      %929 = vst.msk [vmem:[#allocation3 + $0x2] sm:$0x1] %vm926, %v676
      %930 = vst.msk [vmem:[#allocation3 + $0x3] sm:$0x1] %vm926, %v695
      %931 = vst.msk [vmem:[#allocation3 + $0x4] sm:$0x1] %vm926, %v714
      %932 = vst.msk [vmem:[#allocation3 + $0x5] sm:$0x1] %vm926, %v733
      %933 = vst.msk [vmem:[#allocation3 + $0x6] sm:$0x1] %vm926, %v752
      %934 = vst.msk [vmem:[#allocation3 + $0x7] sm:$0x1] %vm926, %v771
      %935 = vst.msk [vmem:[#allocation3 + $0x8] sm:$0x1] %vm926, %v790
      %936 = vst.msk [vmem:[#allocation3 + $0x9] sm:$0x1] %vm926, %v809
      %937 = vst.msk [vmem:[#allocation3 + $0xa] sm:$0x1] %vm926, %v828
      %938 = vst.msk [vmem:[#allocation3 + $0xb] sm:$0x1] %vm926, %v847
      %939 = vst.msk [vmem:[#allocation3 + $0xc] sm:$0x1] %vm926, %v866
      %940 = vst.msk [vmem:[#allocation3 + $0xd] sm:$0x1] %vm926, %v885
      %941 = vst.msk [vmem:[#allocation3 + $0xe] sm:$0x1] %vm926, %v904
      %942 = vst.msk [vmem:[#allocation3 + $0xf] sm:$0x1] %vm926, %v923
      %v943 = vld [vmem:[#allocation3] sm:$0x1]
      %v944 = vld [vmem:[#allocation3 + $0x1] sm:$0x1]
      %v945 = vld [vmem:[#allocation3 + $0x2] sm:$0x1]
      %v946 = vld [vmem:[#allocation3 + $0x3] sm:$0x1]
      %v947 = vld [vmem:[#allocation3 + $0x4] sm:$0x1]
      %v948 = vld [vmem:[#allocation3 + $0x5] sm:$0x1]
      %v949 = vld [vmem:[#allocation3 + $0x6] sm:$0x1]
      %v950 = vld [vmem:[#allocation3 + $0x7] sm:$0x1]
      %v951 = vld [vmem:[#allocation3 + $0x8] sm:$0x1]
      %v952 = vld [vmem:[#allocation3 + $0x9] sm:$0x1]
      %v953 = vld [vmem:[#allocation3 + $0xa] sm:$0x1]
      %v954 = vld [vmem:[#allocation3 + $0xb] sm:$0x1]
      %v955 = vld [vmem:[#allocation3 + $0xc] sm:$0x1]
      %v956 = vld [vmem:[#allocation3 + $0xd] sm:$0x1]
      %v957 = vld [vmem:[#allocation3 + $0xe] sm:$0x1]
      %v958 = vld [vmem:[#allocation3 + $0xf] sm:$0x1]
      %v959 = vpack.c.bf16 %v943, %v943
      %v960 = vpack.c.bf16 %v944, %v944
      %v961 = vpack.c.bf16 %v945, %v945
      %v962 = vpack.c.bf16 %v946, %v946
      %v963 = vpack.c.bf16 %v947, %v947
      %v964 = vpack.c.bf16 %v948, %v948
      %v965 = vpack.c.bf16 %v949, %v949
      %v966 = vpack.c.bf16 %v950, %v950
      %v967 = vpack.c.bf16 %v951, %v951
      %v968 = vpack.c.bf16 %v952, %v952
      %v969 = vpack.c.bf16 %v953, %v953
      %v970 = vpack.c.bf16 %v954, %v954
      %v971 = vpack.c.bf16 %v955, %v955
      %v972 = vpack.c.bf16 %v956, %v956
      %v973 = vpack.c.bf16 %v957, %v957
      %v974 = vpack.c.bf16 %v958, %v958
      %v975 = vld [vmem:[%s8] sm:$0xf]
      %v976 = vld [vmem:[%s8 + $0x4] sm:$0xf]
      %v977 = vld [vmem:[%s9] sm:$0xf]
      %v978 = vld [vmem:[%s9 + $0x4] sm:$0xf]
      %v979 = vld [vmem:[%s9 + $0x8] sm:$0xf]
      %v980 = vld [vmem:[%s9 + $0xc] sm:$0xf]
      %v997 = vunpack.c.l.b16 %v959
      %v998 = vunpack.c.l.b16 %v960
      %v999 = vunpack.c.l.b16 %v961
      %v1000 = vunpack.c.l.b16 %v962
      %v1001 = vunpack.c.l.b16 %v963
      %v1002 = vunpack.c.l.b16 %v964
      %v1003 = vunpack.c.l.b16 %v965
      %v1004 = vunpack.c.l.b16 %v966
      %v1005 = vunpack.c.l.b16 %v967
      %v1006 = vunpack.c.l.b16 %v968
      %v1007 = vunpack.c.l.b16 %v969
      %v1008 = vunpack.c.l.b16 %v970
      %v1009 = vunpack.c.l.b16 %v971
      %v1010 = vunpack.c.l.b16 %v972
      %v1011 = vunpack.c.l.b16 %v973
      %v1012 = vunpack.c.l.b16 %v974
      %v1013 = vrot.slane %v998, 7
      %v1014 = vsel %vm527, %v1013, %v997
      %v1015 = vrot.slane %v999, 6
      %v1016 = vsel %vm529, %v1015, %v1014
      %v1017 = vrot.slane %v1000, 5
      %v1018 = vsel %vm531, %v1017, %v1016
      %v1019 = vrot.slane %v1001, 4
      %v1020 = vsel %vm533, %v1019, %v1018
      %v1021 = vrot.slane %v1002, 3
      %v1022 = vsel %vm535, %v1021, %v1020
      %v1023 = vrot.slane %v1003, 2
      %v1024 = vsel %vm537, %v1023, %v1022
      %v1025 = vrot.slane %v1004, 1
      %v1026 = vsel %vm539, %v1025, %v1024
      %v1027 = vrot.slane %v1006, 7
      %v1028 = vsel %vm527, %v1027, %v1005
      %v1029 = vrot.slane %v1007, 6
      %v1030 = vsel %vm529, %v1029, %v1028
      %v1031 = vrot.slane %v1008, 5
      %v1032 = vsel %vm531, %v1031, %v1030
      %v1033 = vrot.slane %v1009, 4
      %v1034 = vsel %vm533, %v1033, %v1032
      %v1035 = vrot.slane %v1010, 3
      %v1036 = vsel %vm535, %v1035, %v1034
      %v1037 = vrot.slane %v1011, 2
      %v1038 = vsel %vm537, %v1037, %v1036
      %v1039 = vrot.slane %v1012, 1
      %v1040 = vsel %vm539, %v1039, %v1038
      %v1041 = vpack.c.b16 %v1040, %v1026
      %v1046 = vunpack.c.l.b16 %v977
      %v1047 = vunpack.c.l.b16 %v978
      %v1048 = vunpack.c.l.b16 %v979
      %v1049 = vunpack.c.l.b16 %v980
      %v1050 = vpack.c.b16 %v1047, %v1046
      %v1051 = vpack.c.b16 %v1049, %v1048
      %v1055 = vsel %vm196, %v1041, 0
      %1057 = vmatpush.bf16.msra.mxu0 0
      %1058 = vmatpush.bf16.msra.mxu0 0
      %1059 = vmatpush.bf16.msra.mxu0 0
      %1060 = vmatpush.bf16.msra.mxu0 0
      %1061 = vmatpush.bf16.msra.mxu0 0
      %1062 = vmatpush.bf16.msra.mxu0 0
      %1063 = vmatpush.bf16.msra.mxu0 %v1051
      %1064 = vmatpush.bf16.msra.mxu0 %v1050
      %1065 = vmatmul.bf16.gmra.mxu0 %v1055
      %v1066 = vpop.f32.mrf.mxu0
      %v1067 = vadd.f32 0.0, %v1066
      %v1068 = vpop.f32.mrf.mxu0
      %v1069 = vadd.f32 0.0, %v1068
      %1070 = vdwg.mxu0
      %v1073 = vunpack.c.l.b16 %v153
      %v1074 = vunpack.c.l.b16 %v154
      %v1075 = vpack.c.b16 %v1074, %v1073
      %v1078 = vunpack.c.l.b16 %v975
      %v1079 = vunpack.c.l.b16 %v976
      %v1080 = vpack.c.b16 %v1079, %v1078
      %vm1082 = vcmask 130048
      %v1084 = vsel %vm1082, %v1075, 0
      %1086 = vmatpush.bf16.msra.mxu0 0
      %1087 = vmatpush.bf16.msra.mxu0 0
      %1088 = vmatpush.bf16.msra.mxu0 0
      %1089 = vmatpush.bf16.msra.mxu0 0
      %1090 = vmatpush.bf16.msra.mxu0 0
      %1091 = vmatpush.bf16.msra.mxu0 0
      %1092 = vmatpush.bf16.msra.mxu0 0
      %1093 = vmatpush.bf16.msra.mxu0 %v1080
      %1094 = vmatmul.bf16.gmra.mxu0 %v1084
      %v1095 = vpop.f32.mrf.mxu0
      %v1096 = vadd.f32 %v1067, %v1095
      %v1097 = vpop.f32.mrf.mxu0
      %v1098 = vadd.f32 %v1069, %v1097
      %1099 = vdwg.mxu0
      %v1100 = vld [vmem:[#allocation9] sm:$0x1]
      %v1102 = vperm.slane %v1100, 0
      %v1104 = vadd.f32 %v1096, %v1102
      %v1105 = vadd.f32 %v1098, %v1102
      %v1106 = vld [vmem:[%s10] sm:$0xf]
      %v1107 = vld [vmem:[%s10 + $0x4] sm:$0xf]
      %v1108 = vld [vmem:[%s10 + $0x8] sm:$0xf]
      %v1109 = vld [vmem:[%s10 + $0xc] sm:$0xf]
      %v1110 = vld [vmem:[#allocation11] sm:$0x1]
      %v1112 = vperm.slane %v1110, 0
      %v1118 = vunpack.c.l.b16 %v1106
      %v1119 = vunpack.c.l.b16 %v1107
      %v1120 = vunpack.c.l.b16 %v1108
      %v1121 = vunpack.c.l.b16 %v1109
      %v1122 = vpack.c.b16 %v1119, %v1118
      %v1123 = vpack.c.b16 %v1121, %v1120
      %1126 = vmatpush.bf16.msra.mxu0 0
      %1127 = vmatpush.bf16.msra.mxu0 0
      %1128 = vmatpush.bf16.msra.mxu0 0
      %1129 = vmatpush.bf16.msra.mxu0 0
      %1130 = vmatpush.bf16.msra.mxu0 0
      %1131 = vmatpush.bf16.msra.mxu0 0
      %1132 = vmatpush.bf16.msra.mxu0 %v1123
      %1133 = vmatpush.bf16.msra.mxu0 %v1122
      %1134 = vmatmul.bf16.gmra.mxu0 %v198
      %v1135 = vpop.f32.mrf.mxu0
      %v1136 = vadd.f32 %v1112, %v1135
      %v1137 = vpop.f32.mrf.mxu0
      %v1138 = vadd.f32 %v1112, %v1137
      %1139 = vdwg.mxu0
      %v1140 = vadd.f32 %v1104, %v1136
      %v1141 = vadd.f32 %v1105, %v1138
      %v1142 = vxor.u32 %v1140, 2147483648
      %v1143 = vxor.u32 %v1141, 2147483648
      %v1144 = vmul.f32 %v1142, 1.442695
      %v1145 = vpow.pop %v1144
      %v1146 = vmul.f32 %v1143, 1.442695
      %v1147 = vpow.pop %v1146
      %v1148 = vadd.f32 %v1145, 1.0
      %v1149 = vadd.f32 %v1147, 1.0
      %v1150 = vrcp.pop %v1148
      %v1151 = vmul.f32 %v1148, %v1150
      %v1152 = vsub.f32 1.0, %v1151
      %v1153 = vmul.f32 %v1150, %v1152
      %v1154 = vadd.f32 %v1150, %v1153
      %vm1155 = vweird.f32 %v1148
      %vm1156 = vweird.f32 %v1150
      %vm1157 = vmor %vm1155, %vm1156
      %v1158 = vsel %vm1157, %v1150, %v1154
      %v1159 = vand.u32 2147483647, %v1148
      %vm1160 = vcmp.eq.f32.partialorder %v1159, 8.507059e+37
      %v1161 = vand.u32 %v1148, 2147483648
      %v1162 = vor.u32 1.1754944e-38, %v1161
      %v1163 = vsel %vm1160, %v1162, %v1158
      %v1164 = vmul.f32 1.0, %v1163
      %v1165 = vrcp.pop %v1149
      %v1166 = vmul.f32 %v1149, %v1165
      %v1167 = vsub.f32 1.0, %v1166
      %v1168 = vmul.f32 %v1165, %v1167
      %v1169 = vadd.f32 %v1165, %v1168
      %vm1170 = vweird.f32 %v1149
      %vm1171 = vweird.f32 %v1165
      %vm1172 = vmor %vm1170, %vm1171
      %v1173 = vsel %vm1172, %v1165, %v1169
      %v1174 = vand.u32 2147483647, %v1149
      %vm1175 = vcmp.eq.f32.partialorder %v1174, 8.507059e+37
      %v1176 = vand.u32 %v1149, 2147483648
      %v1177 = vor.u32 1.1754944e-38, %v1176
      %v1178 = vsel %vm1175, %v1177, %v1173
      %v1179 = vmul.f32 1.0, %v1178
      %s1180 = scalar_lea.vmem %s8, 8
      %v1181 = vld [vmem:[%s1180] sm:$0xf]
      %v1182 = vld [vmem:[%s1180 + $0x4] sm:$0xf]
      %s1183 = scalar_lea.vmem %s9, 16
      %v1184 = vld [vmem:[%s1183] sm:$0xf]
      %v1185 = vld [vmem:[%s1183 + $0x4] sm:$0xf]
      %v1186 = vld [vmem:[%s1183 + $0x8] sm:$0xf]
      %v1187 = vld [vmem:[%s1183 + $0xc] sm:$0xf]
      %v1192 = vunpack.c.l.b16 %v1184
      %v1193 = vunpack.c.l.b16 %v1185
      %v1194 = vunpack.c.l.b16 %v1186
      %v1195 = vunpack.c.l.b16 %v1187
      %v1196 = vpack.c.b16 %v1193, %v1192
      %v1197 = vpack.c.b16 %v1195, %v1194
      %1200 = vmatpush.bf16.msra.mxu0 0
      %1201 = vmatpush.bf16.msra.mxu0 0
      %1202 = vmatpush.bf16.msra.mxu0 0
      %1203 = vmatpush.bf16.msra.mxu0 0
      %1204 = vmatpush.bf16.msra.mxu0 0
      %1205 = vmatpush.bf16.msra.mxu0 0
      %1206 = vmatpush.bf16.msra.mxu0 %v1197
      %1207 = vmatpush.bf16.msra.mxu0 %v1196
      %1208 = vmatmul.bf16.gmra.mxu0 %v1055
      %v1209 = vpop.f32.mrf.mxu0
      %v1210 = vadd.f32 0.0, %v1209
      %v1211 = vpop.f32.mrf.mxu0
      %v1212 = vadd.f32 0.0, %v1211
      %1213 = vdwg.mxu0
      %v1216 = vunpack.c.l.b16 %v1181
      %v1217 = vunpack.c.l.b16 %v1182
      %v1218 = vpack.c.b16 %v1217, %v1216
      %1220 = vmatpush.bf16.msra.mxu0 0
      %1221 = vmatpush.bf16.msra.mxu0 0
      %1222 = vmatpush.bf16.msra.mxu0 0
      %1223 = vmatpush.bf16.msra.mxu0 0
      %1224 = vmatpush.bf16.msra.mxu0 0
      %1225 = vmatpush.bf16.msra.mxu0 0
      %1226 = vmatpush.bf16.msra.mxu0 0
      %1227 = vmatpush.bf16.msra.mxu0 %v1218
      %1228 = vmatmul.bf16.gmra.mxu0 %v1084
      %v1229 = vpop.f32.mrf.mxu0
      %v1230 = vadd.f32 %v1210, %v1229
      %v1231 = vpop.f32.mrf.mxu0
      %v1232 = vadd.f32 %v1212, %v1231
      %1233 = vdwg.mxu0
      %s1234 = scalar_lea.vmem [#allocation9], 1
      %v1235 = vld [vmem:[%s1234] sm:$0x1]
      %v1237 = vperm.slane %v1235, 0
      %v1239 = vadd.f32 %v1230, %v1237
      %v1240 = vadd.f32 %v1232, %v1237
      %s1241 = scalar_lea.vmem %s10, 16
      %v1242 = vld [vmem:[%s1241] sm:$0xf]
      %v1243 = vld [vmem:[%s1241 + $0x4] sm:$0xf]
      %v1244 = vld [vmem:[%s1241 + $0x8] sm:$0xf]
      %v1245 = vld [vmem:[%s1241 + $0xc] sm:$0xf]
      %s1246 = scalar_lea.vmem [#allocation11], 1
      %v1247 = vld [vmem:[%s1246] sm:$0x1]
      %v1249 = vperm.slane %v1247, 0
      %v1255 = vunpack.c.l.b16 %v1242
      %v1256 = vunpack.c.l.b16 %v1243
      %v1257 = vunpack.c.l.b16 %v1244
      %v1258 = vunpack.c.l.b16 %v1245
      %v1259 = vpack.c.b16 %v1256, %v1255
      %v1260 = vpack.c.b16 %v1258, %v1257
      %1263 = vmatpush.bf16.msra.mxu0 0
      %1264 = vmatpush.bf16.msra.mxu0 0
      %1265 = vmatpush.bf16.msra.mxu0 0
      %1266 = vmatpush.bf16.msra.mxu0 0
      %1267 = vmatpush.bf16.msra.mxu0 0
      %1268 = vmatpush.bf16.msra.mxu0 0
      %1269 = vmatpush.bf16.msra.mxu0 %v1260
      %1270 = vmatpush.bf16.msra.mxu0 %v1259
      %1271 = vmatmul.bf16.gmra.mxu0 %v198
      %v1272 = vpop.f32.mrf.mxu0
      %v1273 = vadd.f32 %v1249, %v1272
      %v1274 = vpop.f32.mrf.mxu0
      %v1275 = vadd.f32 %v1249, %v1274
      %1276 = vdwg.mxu0
      %v1277 = vadd.f32 %v1239, %v1273
      %v1278 = vadd.f32 %v1240, %v1275
      %v1279 = vxor.u32 %v1277, 2147483648
      %v1280 = vxor.u32 %v1278, 2147483648
      %v1281 = vmul.f32 %v1279, 1.442695
      %v1282 = vpow.pop %v1281
      %v1283 = vmul.f32 %v1280, 1.442695
      %v1284 = vpow.pop %v1283
      %v1285 = vadd.f32 %v1282, 1.0
      %v1286 = vadd.f32 %v1284, 1.0
      %v1287 = vrcp.pop %v1285
      %v1288 = vmul.f32 %v1285, %v1287
      %v1289 = vsub.f32 1.0, %v1288
      %v1290 = vmul.f32 %v1287, %v1289
      %v1291 = vadd.f32 %v1287, %v1290
      %vm1292 = vweird.f32 %v1285
      %vm1293 = vweird.f32 %v1287
      %vm1294 = vmor %vm1292, %vm1293
      %v1295 = vsel %vm1294, %v1287, %v1291
      %v1296 = vand.u32 2147483647, %v1285
      %vm1297 = vcmp.eq.f32.partialorder %v1296, 8.507059e+37
      %v1298 = vand.u32 %v1285, 2147483648
      %v1299 = vor.u32 1.1754944e-38, %v1298
      %v1300 = vsel %vm1297, %v1299, %v1295
      %v1301 = vmul.f32 1.0, %v1300
      %v1302 = vrcp.pop %v1286
      %v1303 = vmul.f32 %v1286, %v1302
      %v1304 = vsub.f32 1.0, %v1303
      %v1305 = vmul.f32 %v1302, %v1304
      %v1306 = vadd.f32 %v1302, %v1305
      %vm1307 = vweird.f32 %v1286
      %vm1308 = vweird.f32 %v1302
      %vm1309 = vmor %vm1307, %vm1308
      %v1310 = vsel %vm1309, %v1302, %v1306
      %v1311 = vand.u32 2147483647, %v1286
      %vm1312 = vcmp.eq.f32.partialorder %v1311, 8.507059e+37
      %v1313 = vand.u32 %v1286, 2147483648
      %v1314 = vor.u32 1.1754944e-38, %v1313
      %v1315 = vsel %vm1312, %v1314, %v1310
      %v1316 = vmul.f32 1.0, %v1315
      %s1317 = scalar_lea.vmem %s8, 16
      %v1318 = vld [vmem:[%s1317] sm:$0xf]
      %v1319 = vld [vmem:[%s1317 + $0x4] sm:$0xf]
      %s1320 = scalar_lea.vmem %s9, 32
      %v1321 = vld [vmem:[%s1320] sm:$0xf]
      %v1322 = vld [vmem:[%s1320 + $0x4] sm:$0xf]
      %v1323 = vld [vmem:[%s1320 + $0x8] sm:$0xf]
      %v1324 = vld [vmem:[%s1320 + $0xc] sm:$0xf]
      %v1329 = vunpack.c.l.b16 %v1321
      %v1330 = vunpack.c.l.b16 %v1322
      %v1331 = vunpack.c.l.b16 %v1323
      %v1332 = vunpack.c.l.b16 %v1324
      %v1333 = vpack.c.b16 %v1330, %v1329
      %v1334 = vpack.c.b16 %v1332, %v1331
      %1337 = vmatpush.bf16.msra.mxu0 0
      %1338 = vmatpush.bf16.msra.mxu0 0
      %1339 = vmatpush.bf16.msra.mxu0 0
      %1340 = vmatpush.bf16.msra.mxu0 0
      %1341 = vmatpush.bf16.msra.mxu0 0
      %1342 = vmatpush.bf16.msra.mxu0 0
      %1343 = vmatpush.bf16.msra.mxu0 %v1334
      %1344 = vmatpush.bf16.msra.mxu0 %v1333
      %1345 = vmatmul.bf16.gmra.mxu0 %v1055
      %v1346 = vpop.f32.mrf.mxu0
      %v1347 = vadd.f32 0.0, %v1346
      %v1348 = vpop.f32.mrf.mxu0
      %v1349 = vadd.f32 0.0, %v1348
      %1350 = vdwg.mxu0
      %v1353 = vunpack.c.l.b16 %v1318
      %v1354 = vunpack.c.l.b16 %v1319
      %v1355 = vpack.c.b16 %v1354, %v1353
      %1357 = vmatpush.bf16.msra.mxu0 0
      %1358 = vmatpush.bf16.msra.mxu0 0
      %1359 = vmatpush.bf16.msra.mxu0 0
      %1360 = vmatpush.bf16.msra.mxu0 0
      %1361 = vmatpush.bf16.msra.mxu0 0
      %1362 = vmatpush.bf16.msra.mxu0 0
      %1363 = vmatpush.bf16.msra.mxu0 0
      %1364 = vmatpush.bf16.msra.mxu0 %v1355
      %1365 = vmatmul.bf16.gmra.mxu0 %v1084
      %v1366 = vpop.f32.mrf.mxu0
      %v1367 = vadd.f32 %v1347, %v1366
      %v1368 = vpop.f32.mrf.mxu0
      %v1369 = vadd.f32 %v1349, %v1368
      %1370 = vdwg.mxu0
      %s1371 = scalar_lea.vmem [#allocation9], 2
      %v1372 = vld [vmem:[%s1371] sm:$0x1]
      %v1374 = vperm.slane %v1372, 0
      %v1376 = vadd.f32 %v1367, %v1374
      %v1377 = vadd.f32 %v1369, %v1374
      %s1378 = scalar_lea.vmem %s10, 32
      %v1379 = vld [vmem:[%s1378] sm:$0xf]
      %v1380 = vld [vmem:[%s1378 + $0x4] sm:$0xf]
      %v1381 = vld [vmem:[%s1378 + $0x8] sm:$0xf]
      %v1382 = vld [vmem:[%s1378 + $0xc] sm:$0xf]
      %s1383 = scalar_lea.vmem [#allocation11], 2
      %v1384 = vld [vmem:[%s1383] sm:$0x1]
      %v1386 = vperm.slane %v1384, 0
      %v1392 = vunpack.c.l.b16 %v1379
      %v1393 = vunpack.c.l.b16 %v1380
      %v1394 = vunpack.c.l.b16 %v1381
      %v1395 = vunpack.c.l.b16 %v1382
      %v1396 = vpack.c.b16 %v1393, %v1392
      %v1397 = vpack.c.b16 %v1395, %v1394
      %1400 = vmatpush.bf16.msra.mxu0 0
      %1401 = vmatpush.bf16.msra.mxu0 0
      %1402 = vmatpush.bf16.msra.mxu0 0
      %1403 = vmatpush.bf16.msra.mxu0 0
      %1404 = vmatpush.bf16.msra.mxu0 0
      %1405 = vmatpush.bf16.msra.mxu0 0
      %1406 = vmatpush.bf16.msra.mxu0 %v1397
      %1407 = vmatpush.bf16.msra.mxu0 %v1396
      %1408 = vmatmul.bf16.gmra.mxu0 %v198
      %v1409 = vpop.f32.mrf.mxu0
      %v1410 = vadd.f32 %v1386, %v1409
      %v1411 = vpop.f32.mrf.mxu0
      %v1412 = vadd.f32 %v1386, %v1411
      %1413 = vdwg.mxu0
      %v1414 = vmul.f32 %v1164, %v1410
      %v1415 = vmul.f32 %v1179, %v1412
      %v1416 = vadd.f32 %v1376, %v1414
      %v1417 = vadd.f32 %v1377, %v1415
      %v1418 = vtanh.pop %v1416
      %v1419 = vtanh.pop %v1417
      %v1420 = vsub.f32 1.0, %v1301
      %v1421 = vsub.f32 1.0, %v1316
      %v1422 = vmul.f32 %v1420, %v1418
      %v1423 = vmul.f32 %v1421, %v1419
      %v1424 = vmul.f32 %v1301, %v155
      %v1425 = vmul.f32 %v1316, %v156
      %v1426 = vadd.f32 %v1422, %v1424
      %v1427 = vadd.f32 %v1423, %v1425
      %1428 = vst.msk [vmem:[#allocation2] sm:$0xff] %vm196, %v1426
      %1429 = vst.msk [vmem:[#allocation2 + $0x8] sm:$0xff] %vm196, %v1427
      %1430 = vst.msk [vmem:[%s18] sm:$0xff] %vm196, %v1426
      %1431 = vst.msk [vmem:[%s18 + $0x8] sm:$0xff] %vm196, %v1427
    $region97: #{decoder_forward.1} parent=1 // pred_fallthru
      _
    %v1432 = vld [vmem:[#allocation2] sm:$0xff]
    %v1433 = vld [vmem:[#allocation2 + $0x8] sm:$0xff]
    %v1434 = vpack.c.bf16 %v1433, %v1432
    %v1435 = vld [vmem:[#allocation3] sm:$0x1]
    %v1436 = vld [vmem:[#allocation3 + $0x1] sm:$0x1]
    %v1437 = vld [vmem:[#allocation3 + $0x2] sm:$0x1]
    %v1438 = vld [vmem:[#allocation3 + $0x3] sm:$0x1]
    %v1439 = vld [vmem:[#allocation3 + $0x4] sm:$0x1]
    %v1440 = vld [vmem:[#allocation3 + $0x5] sm:$0x1]
    %v1441 = vld [vmem:[#allocation3 + $0x6] sm:$0x1]
    %v1442 = vld [vmem:[#allocation3 + $0x7] sm:$0x1]
    %v1443 = vld [vmem:[#allocation3 + $0x8] sm:$0x1]
    %v1444 = vld [vmem:[#allocation3 + $0x9] sm:$0x1]
    %v1445 = vld [vmem:[#allocation3 + $0xa] sm:$0x1]
    %v1446 = vld [vmem:[#allocation3 + $0xb] sm:$0x1]
    %v1447 = vld [vmem:[#allocation3 + $0xc] sm:$0x1]
    %v1448 = vld [vmem:[#allocation3 + $0xd] sm:$0x1]
    %v1449 = vld [vmem:[#allocation3 + $0xe] sm:$0x1]
    %v1450 = vld [vmem:[#allocation3 + $0xf] sm:$0x1]
    %v1451 = vpack.c.bf16 %v1435, %v1435
    %v1452 = vpack.c.bf16 %v1436, %v1436
    %v1453 = vpack.c.bf16 %v1437, %v1437
    %v1454 = vpack.c.bf16 %v1438, %v1438
    %v1455 = vpack.c.bf16 %v1439, %v1439
    %v1456 = vpack.c.bf16 %v1440, %v1440
    %v1457 = vpack.c.bf16 %v1441, %v1441
    %v1458 = vpack.c.bf16 %v1442, %v1442
    %v1459 = vpack.c.bf16 %v1443, %v1443
    %v1460 = vpack.c.bf16 %v1444, %v1444
    %v1461 = vpack.c.bf16 %v1445, %v1445
    %v1462 = vpack.c.bf16 %v1446, %v1446
    %v1463 = vpack.c.bf16 %v1447, %v1447
    %v1464 = vpack.c.bf16 %v1448, %v1448
    %v1465 = vpack.c.bf16 %v1449, %v1449
    %v1466 = vpack.c.bf16 %v1450, %v1450
    %v1467 = vld [vmem:[%s13] sm:$0xff]
    %v1468 = vld [vmem:[%s13 + $0x8] sm:$0xff]
    %v1469 = vld [vmem:[%s13 + $0x10] sm:$0xff]
    %v1470 = vld [vmem:[%s13 + $0x18] sm:$0xff]
    %v1471 = vld [vmem:[%s14] sm:$0xff]
    %v1472 = vld [vmem:[%s14 + $0x8] sm:$0xff]
    %v1473 = vld [vmem:[%s14 + $0x10] sm:$0xff]
    %v1474 = vld [vmem:[%s14 + $0x18] sm:$0xff]
    %v1491 = vunpack.c.l.b16 %v1451
    %v1492 = vunpack.c.l.b16 %v1452
    %v1493 = vunpack.c.l.b16 %v1453
    %v1494 = vunpack.c.l.b16 %v1454
    %v1495 = vunpack.c.l.b16 %v1455
    %v1496 = vunpack.c.l.b16 %v1456
    %v1497 = vunpack.c.l.b16 %v1457
    %v1498 = vunpack.c.l.b16 %v1458
    %v1499 = vunpack.c.l.b16 %v1459
    %v1500 = vunpack.c.l.b16 %v1460
    %v1501 = vunpack.c.l.b16 %v1461
    %v1502 = vunpack.c.l.b16 %v1462
    %v1503 = vunpack.c.l.b16 %v1463
    %v1504 = vunpack.c.l.b16 %v1464
    %v1505 = vunpack.c.l.b16 %v1465
    %v1506 = vunpack.c.l.b16 %v1466
    %v1507 = vrot.slane %v1492, 7
    %vm1508 = vcmask 1041409
    %v1509 = vsel %vm1508, %v1507, %v1491
    %v1510 = vrot.slane %v1493, 6
    %vm1511 = vcmask 1042434
    %v1512 = vsel %vm1511, %v1510, %v1509
    %v1513 = vrot.slane %v1494, 5
    %vm1514 = vcmask 1043459
    %v1515 = vsel %vm1514, %v1513, %v1512
    %v1516 = vrot.slane %v1495, 4
    %vm1517 = vcmask 1044484
    %v1518 = vsel %vm1517, %v1516, %v1515
    %v1519 = vrot.slane %v1496, 3
    %vm1520 = vcmask 1045509
    %v1521 = vsel %vm1520, %v1519, %v1518
    %v1522 = vrot.slane %v1497, 2
    %vm1523 = vcmask 1046534
    %v1524 = vsel %vm1523, %v1522, %v1521
    %v1525 = vrot.slane %v1498, 1
    %vm1526 = vcmask 1047559
    %v1527 = vsel %vm1526, %v1525, %v1524
    %v1528 = vrot.slane %v1500, 7
    %v1529 = vsel %vm1508, %v1528, %v1499
    %v1530 = vrot.slane %v1501, 6
    %v1531 = vsel %vm1511, %v1530, %v1529
    %v1532 = vrot.slane %v1502, 5
    %v1533 = vsel %vm1514, %v1532, %v1531
    %v1534 = vrot.slane %v1503, 4
    %v1535 = vsel %vm1517, %v1534, %v1533
    %v1536 = vrot.slane %v1504, 3
    %v1537 = vsel %vm1520, %v1536, %v1535
    %v1538 = vrot.slane %v1505, 2
    %v1539 = vsel %vm1523, %v1538, %v1537
    %v1540 = vrot.slane %v1506, 1
    %v1541 = vsel %vm1526, %v1540, %v1539
    %v1542 = vpack.c.b16 %v1541, %v1527
    %v1547 = vunpack.c.l.b16 %v1471
    %v1548 = vunpack.c.h.b16 %v1471
    %v1549 = vunpack.c.l.b16 %v1472
    %v1550 = vunpack.c.h.b16 %v1472
    %v1551 = vunpack.c.l.b16 %v1473
    %v1552 = vunpack.c.h.b16 %v1473
    %v1553 = vunpack.c.l.b16 %v1474
    %v1554 = vunpack.c.h.b16 %v1474
    %v1555 = vpack.c.b16 %v1549, %v1547
    %v1556 = vpack.c.b16 %v1550, %v1548
    %v1557 = vpack.c.b16 %v1553, %v1551
    %v1558 = vpack.c.b16 %v1554, %v1552
    %vm1563 = vcmask 261120
    %v1565 = vsel %vm1563, %v1542, 0
    %1567 = vmatpush.bf16.msra.mxu0 0
    %1568 = vmatpush.bf16.msra.mxu0 0
    %1569 = vmatpush.bf16.msra.mxu0 0
    %1570 = vmatpush.bf16.msra.mxu0 0
    %1571 = vmatpush.bf16.msra.mxu0 0
    %1572 = vmatpush.bf16.msra.mxu0 0
    %1573 = vmatpush.bf16.msra.mxu0 %v1557
    %1574 = vmatpush.bf16.msra.mxu0 %v1555
    %1575 = vmatmul.bf16.gmra.mxu0 %v1565
    %v1576 = vpop.f32.mrf.mxu0
    %v1577 = vadd.f32 0.0, %v1576
    %v1578 = vpop.f32.mrf.mxu0
    %v1579 = vadd.f32 0.0, %v1578
    %1580 = vdwg.mxu0
    %1581 = vmatpush.bf16.msra.mxu0 0
    %1582 = vmatpush.bf16.msra.mxu0 0
    %1583 = vmatpush.bf16.msra.mxu0 0
    %1584 = vmatpush.bf16.msra.mxu0 0
    %1585 = vmatpush.bf16.msra.mxu0 0
    %1586 = vmatpush.bf16.msra.mxu0 0
    %1587 = vmatpush.bf16.msra.mxu0 %v1558
    %1588 = vmatpush.bf16.msra.mxu0 %v1556
    %1589 = vmatmul.bf16.gmra.mxu0 %v1565
    %v1590 = vpop.f32.mrf.mxu0
    %v1591 = vadd.f32 0.0, %v1590
    %v1592 = vpop.f32.mrf.mxu0
    %v1593 = vadd.f32 0.0, %v1592
    %1594 = vdwg.mxu0
    %v1599 = vunpack.c.l.b16 %v1467
    %v1600 = vunpack.c.h.b16 %v1467
    %v1601 = vunpack.c.l.b16 %v1468
    %v1602 = vunpack.c.h.b16 %v1468
    %v1603 = vunpack.c.l.b16 %v1469
    %v1604 = vunpack.c.h.b16 %v1469
    %v1605 = vunpack.c.l.b16 %v1470
    %v1606 = vunpack.c.h.b16 %v1470
    %v1607 = vpack.c.b16 %v1601, %v1599
    %v1608 = vpack.c.b16 %v1602, %v1600
    %v1609 = vpack.c.b16 %v1605, %v1603
    %v1610 = vpack.c.b16 %v1606, %v1604
    %v1616 = vsel %vm1563, %v1434, 0
    %1618 = vmatpush.bf16.msra.mxu0 0
    %1619 = vmatpush.bf16.msra.mxu0 0
    %1620 = vmatpush.bf16.msra.mxu0 0
    %1621 = vmatpush.bf16.msra.mxu0 0
    %1622 = vmatpush.bf16.msra.mxu0 0
    %1623 = vmatpush.bf16.msra.mxu0 0
    %1624 = vmatpush.bf16.msra.mxu0 %v1609
    %1625 = vmatpush.bf16.msra.mxu0 %v1607
    %1626 = vmatmul.bf16.gmra.mxu0 %v1616
    %v1627 = vpop.f32.mrf.mxu0
    %v1628 = vadd.f32 %v1577, %v1627
    %v1629 = vpop.f32.mrf.mxu0
    %v1630 = vadd.f32 %v1579, %v1629
    %1631 = vdwg.mxu0
    %1632 = vmatpush.bf16.msra.mxu0 0
    %1633 = vmatpush.bf16.msra.mxu0 0
    %1634 = vmatpush.bf16.msra.mxu0 0
    %1635 = vmatpush.bf16.msra.mxu0 0
    %1636 = vmatpush.bf16.msra.mxu0 0
    %1637 = vmatpush.bf16.msra.mxu0 0
    %1638 = vmatpush.bf16.msra.mxu0 %v1610
    %1639 = vmatpush.bf16.msra.mxu0 %v1608
    %1640 = vmatmul.bf16.gmra.mxu0 %v1616
    %v1641 = vpop.f32.mrf.mxu0
    %v1642 = vadd.f32 %v1591, %v1641
    %v1643 = vpop.f32.mrf.mxu0
    %v1644 = vadd.f32 %v1593, %v1643
    %1645 = vdwg.mxu0
    %v1646 = vld [vmem:[%s0] sm:$0xf]
    %v1647 = vld [vmem:[%s0 + $0x4] sm:$0xf]
    %v1648 = vld [vmem:[%s15] sm:$0xff]
    %v1649 = vld [vmem:[%s15 + $0x8] sm:$0xff]
    %v1652 = vunpack.c.l.b16 %v1646
    %v1653 = vunpack.c.l.b16 %v1647
    %v1654 = vpack.c.b16 %v1653, %v1652
    %v1657 = vunpack.c.l.b16 %v1648
    %v1658 = vunpack.c.h.b16 %v1648
    %v1659 = vunpack.c.l.b16 %v1649
    %v1660 = vunpack.c.h.b16 %v1649
    %v1661 = vpack.c.b16 %v1659, %v1657
    %v1662 = vpack.c.b16 %v1660, %v1658
    %vm1665 = vcmask 130048
    %v1667 = vsel %vm1665, %v1654, 0
    %1669 = vmatpush.bf16.msra.mxu0 0
    %1670 = vmatpush.bf16.msra.mxu0 0
    %1671 = vmatpush.bf16.msra.mxu0 0
    %1672 = vmatpush.bf16.msra.mxu0 0
    %1673 = vmatpush.bf16.msra.mxu0 0
    %1674 = vmatpush.bf16.msra.mxu0 0
    %1675 = vmatpush.bf16.msra.mxu0 0
    %1676 = vmatpush.bf16.msra.mxu0 %v1661
    %1677 = vmatmul.bf16.gmra.mxu0 %v1667
    %v1678 = vpop.f32.mrf.mxu0
    %v1679 = vadd.f32 0.0, %v1678
    %v1680 = vpop.f32.mrf.mxu0
    %v1681 = vadd.f32 0.0, %v1680
    %1682 = vdwg.mxu0
    %1683 = vmatpush.bf16.msra.mxu0 0
    %1684 = vmatpush.bf16.msra.mxu0 0
    %1685 = vmatpush.bf16.msra.mxu0 0
    %1686 = vmatpush.bf16.msra.mxu0 0
    %1687 = vmatpush.bf16.msra.mxu0 0
    %1688 = vmatpush.bf16.msra.mxu0 0
    %1689 = vmatpush.bf16.msra.mxu0 0
    %1690 = vmatpush.bf16.msra.mxu0 %v1662
    %1691 = vmatmul.bf16.gmra.mxu0 %v1667
    %v1692 = vpop.f32.mrf.mxu0
    %v1693 = vadd.f32 0.0, %v1692
    %v1694 = vpop.f32.mrf.mxu0
    %v1695 = vadd.f32 0.0, %v1694
    %1696 = vdwg.mxu0
    %v1697 = vadd.f32 %v1628, %v1679
    %v1698 = vadd.f32 %v1642, %v1693
    %v1699 = vadd.f32 %v1630, %v1681
    %v1700 = vadd.f32 %v1644, %v1695
    %v1701 = vld [vmem:[#allocation12] sm:$0x3]
    %v1703 = vperm.slane %v1701, 0
    %v1704 = vperm.slane %v1701, 1
    %v1707 = vadd.f32 %v1697, %v1703
    %v1708 = vadd.f32 %v1698, %v1704
    %v1709 = vadd.f32 %v1699, %v1703
    %v1710 = vadd.f32 %v1700, %v1704
    %1711 = vst [vmem:[%s17] sm:$0xff] %v1707
    %1712 = vst [vmem:[%s17 + $0x8] sm:$0xff] %v1708
    %1713 = vst [vmem:[%s17 + $0x10] sm:$0xff] %v1709
    %1714 = vst [vmem:[%s17 + $0x18] sm:$0xff] %v1710
    // Predicated region
    $region98: #{decoder_forward.1} parent=1 // pred_check
      _
    $region99: #{decoder_forward.1} parent=1 // pred_check_branch
      %1716 = sbr.rel (0) target = $region101
    $region100: #{decoder_forward.1} parent=1 // pred_region
      _
    $region101: #{decoder_forward.1} parent=1 // pred_fallthru
      _
    // Predicated region
    $region102: #{decoder_forward.1} parent=1 // pred_check
      _
    $region103: #{decoder_forward.1} parent=1 // pred_check_branch
      %1718 = sbr.rel (0) target = $region105
    $region104: #{decoder_forward.1} parent=1 // pred_region
      _
    $region105: #{decoder_forward.1} parent=1 // pred_fallthru
      _
    // Predicated region
    $region106: #{decoder_forward.1} parent=1 // pred_check
      _
    $region107: #{decoder_forward.1} parent=1 // pred_check_branch
      %1720 = sbr.rel (0) target = $region109
    $region108: #{decoder_forward.1} parent=1 // pred_region
      _
    $region109: #{decoder_forward.1} parent=1 // pred_fallthru
      _
    // Predicated region
    $region110: #{decoder_forward.1} parent=1 // pred_check
      _
    $region111: #{decoder_forward.1} parent=1 // pred_check_branch
      %1722 = sbr.rel (0) target = $region113
    $region112: #{decoder_forward.1} parent=1 // pred_region
      _
    $region113: #{decoder_forward.1} parent=1 // pred_fallthru
      _
    %1723 = vsyncpa [#allocation5], 1
    %1724 = vsyncpa [#allocation7], 1
    %1725 = vsyncpa [#allocation10], 1
    %1726 = vsyncpa [#allocation13], 1

</llo_original>
